<compile_context>
chip_gen: v5e
topology: v5e:2x2
jax: 0.10.0
libtpu: 0.0.40
codegen_flags: <defaults>
</compile_context>

<pallas_src>
import functools

import jax
import jax.numpy as jnp
from jax.experimental import pallas as pl
from jax.experimental.pallas import tpu as pltpu  # noqa: F401  (kept for parity)


def _round_up(n, m):
    return ((n + m - 1) // m) * m


# -----------------------------------------------------------------------------
# Fused Pallas kernel: all LSTM layers + FC head in a single (grid-less) call.
# -----------------------------------------------------------------------------
def _make_lstm_fused_kernel(num_layers, S, Bp, D, H):
    f32 = jnp.float32
    G = 4 * H  # gate-concatenated width ([i, f, g, o] along lanes)

    def kernel(x_ref, wih0_ref, b0_ref, whh_ref, wihr_ref, brest_ref,
               h0_ref, c0_ref, wfc_ref, bfc_ref, out_ref, hN_ref, cN_ref):
        # Per-lane affine turning tanh(pre-scaled gates) into
        # [sigmoid(i), sigmoid(f), tanh(g), sigmoid(o)].
        # (The 0.5 pre-scale on sigmoid lanes is folded into the weights.)
        # Built once (loop-invariant) — broadcasts are not CSE'd by JAX.
        lane = jax.lax.broadcasted_iota(jnp.int32, (1, G), 1)
        is_g_lane = (lane >= 2 * H) & (lane < 3 * H)
        post_scale = jnp.where(is_g_lane, 1.0, 0.5).astype(f32)
        post_shift = jnp.where(is_g_lane, 0.0, 0.5).astype(f32)

        y_prev = None  # (S*Bp, H) output sequence of the previous layer (vregs)
        for l in range(num_layers):
            # Batched input projection for ALL timesteps of this layer:
            # one (S*Bp, K) @ (K, 4H) MXU matmul, off the serial recurrent path.
            if l == 0:
                x_in = x_ref[...].reshape(S * Bp, D)
                xp = jnp.dot(x_in, wih0_ref[...],
                             preferred_element_type=f32) + b0_ref[...]
            else:
                xp = jnp.dot(y_prev, wihr_ref[l - 1],
                             preferred_element_type=f32) + brest_ref[l - 1]
            # xp: (S*Bp, 4H), gate order [i, f, g, o] along lanes.

            w_rec = whh_ref[l]                    # (H, 4H), loop-invariant load
            h = h0_ref[l]                         # (Bp, H)
            c = c0_ref[l]
            last_layer = l == num_layers - 1

            hs = []
            # Fully-unrolled static time loop (S small): h/c are vreg-resident
            # loop-carried values; each step = 1 full-width MXU matmul,
            # 2 full-slab EUP pushes, and a handful of VALU/XLU ops.
            # For long sequences switch to lax.fori_loop + time chunking.
            for t in range(S):
                gates = xp[t * Bp:(t + 1) * Bp, :] + jnp.dot(
                    h, w_rec, preferred_element_type=f32)        # (Bp, 4H)
                act = jnp.tanh(gates) * post_scale + post_shift  # 1 EUP push
                # Per-gate lane slices (32-lane views of one 128-lane vreg);
                # the realignment lands in the otherwise-idle XLU slot.
                i_g = act[:, 0 * H:1 * H]
                f_g = act[:, 1 * H:2 * H]
                g_g = act[:, 2 * H:3 * H]
                o_g = act[:, 3 * H:4 * H]
                c = f_g * c + i_g * g_g
                h = o_g * jnp.tanh(c)                            # 2nd EUP push
                if not last_layer:
                    hs.append(h)

            hN_ref[l] = h
            cN_ref[l] = c

            if last_layer:
                # Fused FC head on the final hidden state: no HBM round trip,
                # no separate pallas_call launch.
                out_ref[...] = (jnp.dot(h, wfc_ref[...],
                                        preferred_element_type=f32)
                                + bfc_ref[...])
            else:
                # Next layer's input sequence stays entirely in vregs.
                y_prev = jnp.concatenate(hs, axis=0)             # (S*Bp, H)

    return kernel


# -----------------------------------------------------------------------------
# One-time parameter preparation (outside the jitted forward).
# -----------------------------------------------------------------------------
def prepare_params(params, num_layers):
    """Re-layout PyTorch-style LSTM/Linear weights for the fused kernel.

    - Transposes so matmuls are x @ W, with gate order [i,f,g,o] along lanes.
    - Pre-scales the sigmoid-gate (i, f, o) columns of weights & biases by 0.5
      so the kernel computes all four activations with one tanh per step.
    """
    H = params["w_hh_0"].shape[1]
    G = 4 * H
    f32 = jnp.float32
    lane = jnp.arange(G)
    is_g_lane = (lane >= 2 * H) & (lane < 3 * H)
    gate_scale = jnp.where(is_g_lane, 1.0, 0.5).astype(f32)        # (4H,)

    prep = {
        "wih0": params["w_ih_0"].T.astype(f32) * gate_scale,       # (D, 4H)
        "b0": (params["b_0"] * gate_scale).reshape(1, G).astype(f32),
        "whh": jnp.stack([params[f"w_hh_{l}"].T.astype(f32) * gate_scale
                          for l in range(num_layers)]),            # (L, H, 4H)
        "wfc": params["w_fc"].T.astype(f32),                       # (H, O)
        "bfc": params["b_fc"].reshape(1, -1).astype(f32),          # (1, O)
    }
    if num_layers > 1:
        prep["wih_rest"] = jnp.stack(
            [params[f"w_ih_{l}"].T.astype(f32) * gate_scale
             for l in range(1, num_layers)])                       # (L-1, H, 4H)
        prep["b_rest"] = jnp.stack(
            [(params[f"b_{l}"] * gate_scale).reshape(1, G).astype(f32)
             for l in range(1, num_layers)])                       # (L-1, 1, 4H)
    else:
        # Never read in-kernel (trace-time dead); minimal dummies keep the
        # kernel signature fixed.
        prep["wih_rest"] = jnp.zeros((1, H, G), f32)
        prep["b_rest"] = jnp.zeros((1, 1, G), f32)
    return prep


# -----------------------------------------------------------------------------
# Wrapper (matches LSTMRegressor.forward semantics: x is batch-first)
# -----------------------------------------------------------------------------
@functools.partial(jax.jit, static_argnames=("num_layers",))
def lstm_regressor_forward(x, h0, c0, prep, *, num_layers):
    """x: (batch, seq, input_size); h0/c0: (num_layers, batch, hidden).

    Returns (fc(last_step_hidden), (h_n, c_n)) like LSTMRegressor.forward.
    """
    B, S, D = x.shape
    H = h0.shape[-1]
    O = prep["wfc"].shape[-1]
    Bp = _round_up(max(B, 8), 8)          # pad batch to sublane granularity
    f32 = jnp.float32

    # Sequence-first layout + batch pad: (S, Bp, D). Tiny layout-only ops.
    xs = jnp.transpose(x, (1, 0, 2)).astype(f32)
    xs = jnp.pad(xs, ((0, 0), (0, Bp - B), (0, 0)))
    h0p = jnp.pad(h0.astype(f32), ((0, 0), (0, Bp - B), (0, 0)))
    c0p = jnp.pad(c0.astype(f32), ((0, 0), (0, Bp - B), (0, 0)))

    kernel = _make_lstm_fused_kernel(num_layers, S, Bp, D, H)
    out_p, hN_p, cN_p = pl.pallas_call(
        kernel,
        out_shape=(jax.ShapeDtypeStruct((Bp, O), f32),
                   jax.ShapeDtypeStruct((num_layers, Bp, H), f32),
                   jax.ShapeDtypeStruct((num_layers, Bp, H), f32)),
    )(xs, prep["wih0"], prep["b0"], prep["whh"], prep["wih_rest"],
      prep["b_rest"], h0p, c0p, prep["wfc"], prep["bfc"])

    return out_p[:B], (hN_p[:, :B, :], cN_p[:, :B, :])


# -----------------------------------------------------------------------------
# Pure-JAX reference (mirrors the PyTorch module) for a correctness check
# -----------------------------------------------------------------------------
def _lstm_reference(x, h0, c0, params, num_layers):
    xs = jnp.transpose(x, (1, 0, 2))                            # (S, B, D)
    layer_in = xs
    h_fin, c_fin = [], []
    for l in range(num_layers):
        w_ih = params[f"w_ih_{l}"]
        w_hh = params[f"w_hh_{l}"]
        b = params[f"b_{l}"]
        H = w_hh.shape[1]

        def step(carry, x_t, w_ih=w_ih, w_hh=w_hh, b=b, H=H):
            h, c = carry
            gates = (x_t @ w_ih.T + h @ w_hh.T + b)
            i = jax.nn.sigmoid(gates[:, 0 * H:1 * H])
            f = jax.nn.sigmoid(gates[:, 1 * H:2 * H])
            g = jnp.tanh(gates[:, 2 * H:3 * H])
            o = jax.nn.sigmoid(gates[:, 3 * H:4 * H])
            c = f * c + i * g
            h = o * jnp.tanh(c)
            return (h, c), h

        (h, c), ys = jax.lax.scan(step, (h0[l], c0[l]), layer_in)
        h_fin.append(h)
        c_fin.append(c)
        layer_in = ys
    last = layer_in[-1]                                         # (B, H)
    out = last @ params["w_fc"].T + params["b_fc"]
    return out, (jnp.stack(h_fin), jnp.stack(c_fin))


# -----------------------------------------------------------------------------
# Deterministic parameter construction (matches nn.LSTM / nn.Linear shapes)
# -----------------------------------------------------------------------------
def make_params(key, input_size, hidden_size, num_layers, out_size):
    params = {}
    H = hidden_size
    bound = 1.0 / jnp.sqrt(jnp.float32(H))
    for layer in range(num_layers):
        d_in = input_size if layer == 0 else hidden_size
        key, k1, k2, k3, k4 = jax.random.split(key, 5)
        w_ih = jax.random.uniform(k1, (4 * H, d_in), jnp.float32, -bound, bound)
        w_hh = jax.random.uniform(k2, (4 * H, H), jnp.float32, -bound, bound)
        b_ih = jax.random.uniform(k3, (4 * H,), jnp.float32, -bound, bound)
        b_hh = jax.random.uniform(k4, (4 * H,), jnp.float32, -bound, bound)
        params[f"w_ih_{layer}"] = w_ih
        params[f"w_hh_{layer}"] = w_hh
        params[f"b_{layer}"] = b_ih + b_hh      # combined bias (same semantics)
    key, k5, k6 = jax.random.split(key, 3)
    fc_bound = 1.0 / jnp.sqrt(jnp.float32(H))
    params["w_fc"] = jax.random.uniform(k5, (out_size, H), jnp.float32,
                                        -fc_bound, fc_bound)
    params["b_fc"] = jax.random.uniform(k6, (out_size,), jnp.float32,
                                        -fc_bound, fc_bound)
    return params


# -----------------------------------------------------------------------------
if __name__ == "__main__":
    input_size, hidden_size, num_layers, out_size = 16, 32, 2, 4
    batch, seq = 2, 8

    key = jax.random.PRNGKey(0)
    key, kx = jax.random.split(key)
    x = jax.random.normal(kx, (batch, seq, input_size), jnp.float32)

    # init_hidden: zeros of (num_layers * 1, batch, hidden_size)
    h0 = jnp.zeros((num_layers, batch, hidden_size), jnp.float32)
    c0 = jnp.zeros((num_layers, batch, hidden_size), jnp.float32)

    params = make_params(key, input_size, hidden_size, num_layers, out_size)
    prep = prepare_params(params, num_layers)        # one-time weight re-layout

    out, (h_n, c_n) = lstm_regressor_forward(x, h0, c0, prep,
                                             num_layers=num_layers)
    jax.block_until_ready(out)
    jax.block_until_ready(h_n)
    jax.block_until_ready(c_n)

    assert out.shape == (batch, out_size)
    assert h_n.shape == (num_layers, batch, hidden_size)
    assert c_n.shape == (num_layers, batch, hidden_size)

    out_r, (h_r, c_r) = _lstm_reference(x, h0, c0, params, num_layers)
    assert jnp.allclose(out, out_r, atol=2e-3, rtol=2e-3)
    assert jnp.allclose(h_n, h_r, atol=2e-3, rtol=2e-3)
    assert jnp.allclose(c_n, c_r, atol=2e-3, rtol=2e-3)

    print("KERNEL_OK")
</pallas_src>

<mosaic_0001>
module attributes {stable_mosaic.version = 11 : i64} {
  func.func @kernel(%arg0: memref<8x8x16xf32, #tpu.memory_space<vmem>>, %arg1: memref<16x128xf32, #tpu.memory_space<vmem>>, %arg2: memref<1x128xf32, #tpu.memory_space<vmem>>, %arg3: memref<2x32x128xf32, #tpu.memory_space<vmem>>, %arg4: memref<1x32x128xf32, #tpu.memory_space<vmem>>, %arg5: memref<1x1x128xf32, #tpu.memory_space<vmem>>, %arg6: memref<2x8x32xf32, #tpu.memory_space<vmem>>, %arg7: memref<2x8x32xf32, #tpu.memory_space<vmem>>, %arg8: memref<32x4xf32, #tpu.memory_space<vmem>>, %arg9: memref<1x4xf32, #tpu.memory_space<vmem>>, %arg10: memref<8x4xf32, #tpu.memory_space<vmem>>, %arg11: memref<2x8x32xf32, #tpu.memory_space<vmem>>, %arg12: memref<2x8x32xf32, #tpu.memory_space<vmem>>) attributes {dimension_semantics = [], scalar_prefetch = 0 : i64, scratch_operands = 0 : i64, tpu.core_type = #tpu.core_type<tc>} {
    %0 = tpu.iota {dimensions = array<i32: 1>} : vector<1x128xi32>
    %c64_i32 = arith.constant 64 : i32
    %1 = vector.broadcast %c64_i32 : i32 to vector<1x128xi32>
    %2 = arith.cmpi sge, %0, %1 : vector<1x128xi32>
    %c96_i32 = arith.constant 96 : i32
    %3 = vector.broadcast %c96_i32 : i32 to vector<1x128xi32>
    %4 = arith.cmpi slt, %0, %3 : vector<1x128xi32>
    %5 = arith.andi %2, %4 : vector<1x128xi1>
    %cst = arith.constant 1.000000e+00 : f32
    %cst_0 = arith.constant 5.000000e-01 : f32
    %6 = vector.broadcast %cst : f32 to vector<1x128xf32>
    %7 = vector.broadcast %cst_0 : f32 to vector<1x128xf32>
    %8 = arith.select %5, %6, %7 : vector<1x128xi1>, vector<1x128xf32>
    %cst_1 = arith.constant 0.000000e+00 : f32
    %cst_2 = arith.constant 5.000000e-01 : f32
    %9 = vector.broadcast %cst_1 : f32 to vector<1x128xf32>
    %10 = vector.broadcast %cst_2 : f32 to vector<1x128xf32>
    %11 = arith.select %5, %9, %10 : vector<1x128xi1>, vector<1x128xf32>
    %c0 = arith.constant 0 : index
    %c0_3 = arith.constant 0 : index
    %c0_4 = arith.constant 0 : index
    %12 = vector.load %arg0[%c0, %c0_3, %c0_4] : memref<8x8x16xf32, #tpu.memory_space<vmem>>, vector<8x8x16xf32>
    %13 = vector.shape_cast %12 : vector<8x8x16xf32> to vector<64x16xf32>
    %c0_5 = arith.constant 0 : index
    %c0_6 = arith.constant 0 : index
    %14 = vector.load %arg1[%c0_5, %c0_6] : memref<16x128xf32, #tpu.memory_space<vmem>>, vector<16x128xf32>
    %cst_7 = arith.constant dense<0.000000e+00> : vector<64x128xf32>
    %15 = tpu.matmul %13, %14, %cst_7 {dimension_numbers = #tpu.dot_dimension_numbers<[1], [0], [0], [1], [0, 0, 1, 1], [], []>} : vector<64x16xf32>, vector<16x128xf32>, vector<64x128xf32> -> vector<64x128xf32>
    %c0_8 = arith.constant 0 : index
    %c0_9 = arith.constant 0 : index
    %16 = vector.load %arg2[%c0_8, %c0_9] : memref<1x128xf32, #tpu.memory_space<vmem>>, vector<1x128xf32>
    %17 = vector.broadcast %16 : vector<1x128xf32> to vector<64x128xf32>
    %18 = arith.addf %15, %17 : vector<64x128xf32>
    %c0_10 = arith.constant 0 : index
    %c0_11 = arith.constant 0 : index
    %c0_12 = arith.constant 0 : index
    %19 = vector.load %arg3[%c0_10, %c0_11, %c0_12] : memref<2x32x128xf32, #tpu.memory_space<vmem>>, vector<1x32x128xf32>
    %20 = vector.shape_cast %19 : vector<1x32x128xf32> to vector<32x128xf32>
    %c0_13 = arith.constant 0 : index
    %c0_14 = arith.constant 0 : index
    %c0_15 = arith.constant 0 : index
    %21 = vector.load %arg6[%c0_13, %c0_14, %c0_15] : memref<2x8x32xf32, #tpu.memory_space<vmem>>, vector<1x8x32xf32>
    %22 = vector.shape_cast %21 : vector<1x8x32xf32> to vector<8x32xf32>
    %c0_16 = arith.constant 0 : index
    %c0_17 = arith.constant 0 : index
    %c0_18 = arith.constant 0 : index
    %23 = vector.load %arg7[%c0_16, %c0_17, %c0_18] : memref<2x8x32xf32, #tpu.memory_space<vmem>>, vector<1x8x32xf32>
    %24 = vector.shape_cast %23 : vector<1x8x32xf32> to vector<8x32xf32>
    %25 = vector.extract_strided_slice %18 {offsets = [0, 0], sizes = [8, 128], strides = [1, 1]} : vector<64x128xf32> to vector<8x128xf32>
    %cst_19 = arith.constant dense<0.000000e+00> : vector<8x128xf32>
    %26 = tpu.matmul %22, %20, %cst_19 {dimension_numbers = #tpu.dot_dimension_numbers<[1], [0], [0], [1], [0, 0, 1, 1], [], []>} : vector<8x32xf32>, vector<32x128xf32>, vector<8x128xf32> -> vector<8x128xf32>
    %27 = arith.addf %25, %26 : vector<8x128xf32>
    %28 = math.tanh %27 : vector<8x128xf32>
    %29 = vector.broadcast %8 : vector<1x128xf32> to vector<8x128xf32>
    %30 = arith.mulf %28, %29 : vector<8x128xf32>
    %31 = vector.broadcast %11 : vector<1x128xf32> to vector<8x128xf32>
    %32 = arith.addf %30, %31 : vector<8x128xf32>
    %33 = vector.extract_strided_slice %32 {offsets = [0, 0], sizes = [8, 32], strides = [1, 1]} : vector<8x128xf32> to vector<8x32xf32>
    %34 = vector.extract_strided_slice %32 {offsets = [0, 32], sizes = [8, 32], strides = [1, 1]} : vector<8x128xf32> to vector<8x32xf32>
    %35 = vector.extract_strided_slice %32 {offsets = [0, 64], sizes = [8, 32], strides = [1, 1]} : vector<8x128xf32> to vector<8x32xf32>
    %36 = vector.extract_strided_slice %32 {offsets = [0, 96], sizes = [8, 32], strides = [1, 1]} : vector<8x128xf32> to vector<8x32xf32>
    %37 = arith.mulf %34, %24 : vector<8x32xf32>
    %38 = arith.mulf %33, %35 : vector<8x32xf32>
    %39 = arith.addf %37, %38 : vector<8x32xf32>
    %40 = math.tanh %39 : vector<8x32xf32>
    %41 = arith.mulf %36, %40 : vector<8x32xf32>
    %42 = vector.extract_strided_slice %18 {offsets = [8, 0], sizes = [8, 128], strides = [1, 1]} : vector<64x128xf32> to vector<8x128xf32>
    %cst_20 = arith.constant dense<0.000000e+00> : vector<8x128xf32>
    %43 = tpu.matmul %41, %20, %cst_20 {dimension_numbers = #tpu.dot_dimension_numbers<[1], [0], [0], [1], [0, 0, 1, 1], [], []>} : vector<8x32xf32>, vector<32x128xf32>, vector<8x128xf32> -> vector<8x128xf32>
    %44 = arith.addf %42, %43 : vector<8x128xf32>
    %45 = math.tanh %44 : vector<8x128xf32>
    %46 = vector.broadcast %8 : vector<1x128xf32> to vector<8x128xf32>
    %47 = arith.mulf %45, %46 : vector<8x128xf32>
    %48 = vector.broadcast %11 : vector<1x128xf32> to vector<8x128xf32>
    %49 = arith.addf %47, %48 : vector<8x128xf32>
    %50 = vector.extract_strided_slice %49 {offsets = [0, 0], sizes = [8, 32], strides = [1, 1]} : vector<8x128xf32> to vector<8x32xf32>
    %51 = vector.extract_strided_slice %49 {offsets = [0, 32], sizes = [8, 32], strides = [1, 1]} : vector<8x128xf32> to vector<8x32xf32>
    %52 = vector.extract_strided_slice %49 {offsets = [0, 64], sizes = [8, 32], strides = [1, 1]} : vector<8x128xf32> to vector<8x32xf32>
    %53 = vector.extract_strided_slice %49 {offsets = [0, 96], sizes = [8, 32], strides = [1, 1]} : vector<8x128xf32> to vector<8x32xf32>
    %54 = arith.mulf %51, %39 : vector<8x32xf32>
    %55 = arith.mulf %50, %52 : vector<8x32xf32>
    %56 = arith.addf %54, %55 : vector<8x32xf32>
    %57 = math.tanh %56 : vector<8x32xf32>
    %58 = arith.mulf %53, %57 : vector<8x32xf32>
    %59 = vector.extract_strided_slice %18 {offsets = [16, 0], sizes = [8, 128], strides = [1, 1]} : vector<64x128xf32> to vector<8x128xf32>
    %cst_21 = arith.constant dense<0.000000e+00> : vector<8x128xf32>
    %60 = tpu.matmul %58, %20, %cst_21 {dimension_numbers = #tpu.dot_dimension_numbers<[1], [0], [0], [1], [0, 0, 1, 1], [], []>} : vector<8x32xf32>, vector<32x128xf32>, vector<8x128xf32> -> vector<8x128xf32>
    %61 = arith.addf %59, %60 : vector<8x128xf32>
    %62 = math.tanh %61 : vector<8x128xf32>
    %63 = vector.broadcast %8 : vector<1x128xf32> to vector<8x128xf32>
    %64 = arith.mulf %62, %63 : vector<8x128xf32>
    %65 = vector.broadcast %11 : vector<1x128xf32> to vector<8x128xf32>
    %66 = arith.addf %64, %65 : vector<8x128xf32>
    %67 = vector.extract_strided_slice %66 {offsets = [0, 0], sizes = [8, 32], strides = [1, 1]} : vector<8x128xf32> to vector<8x32xf32>
    %68 = vector.extract_strided_slice %66 {offsets = [0, 32], sizes = [8, 32], strides = [1, 1]} : vector<8x128xf32> to vector<8x32xf32>
    %69 = vector.extract_strided_slice %66 {offsets = [0, 64], sizes = [8, 32], strides = [1, 1]} : vector<8x128xf32> to vector<8x32xf32>
    %70 = vector.extract_strided_slice %66 {offsets = [0, 96], sizes = [8, 32], strides = [1, 1]} : vector<8x128xf32> to vector<8x32xf32>
    %71 = arith.mulf %68, %56 : vector<8x32xf32>
    %72 = arith.mulf %67, %69 : vector<8x32xf32>
    %73 = arith.addf %71, %72 : vector<8x32xf32>
    %74 = math.tanh %73 : vector<8x32xf32>
    %75 = arith.mulf %70, %74 : vector<8x32xf32>
    %76 = vector.extract_strided_slice %18 {offsets = [24, 0], sizes = [8, 128], strides = [1, 1]} : vector<64x128xf32> to vector<8x128xf32>
    %cst_22 = arith.constant dense<0.000000e+00> : vector<8x128xf32>
    %77 = tpu.matmul %75, %20, %cst_22 {dimension_numbers = #tpu.dot_dimension_numbers<[1], [0], [0], [1], [0, 0, 1, 1], [], []>} : vector<8x32xf32>, vector<32x128xf32>, vector<8x128xf32> -> vector<8x128xf32>
    %78 = arith.addf %76, %77 : vector<8x128xf32>
    %79 = math.tanh %78 : vector<8x128xf32>
    %80 = vector.broadcast %8 : vector<1x128xf32> to vector<8x128xf32>
    %81 = arith.mulf %79, %80 : vector<8x128xf32>
    %82 = vector.broadcast %11 : vector<1x128xf32> to vector<8x128xf32>
    %83 = arith.addf %81, %82 : vector<8x128xf32>
    %84 = vector.extract_strided_slice %83 {offsets = [0, 0], sizes = [8, 32], strides = [1, 1]} : vector<8x128xf32> to vector<8x32xf32>
    %85 = vector.extract_strided_slice %83 {offsets = [0, 32], sizes = [8, 32], strides = [1, 1]} : vector<8x128xf32> to vector<8x32xf32>
    %86 = vector.extract_strided_slice %83 {offsets = [0, 64], sizes = [8, 32], strides = [1, 1]} : vector<8x128xf32> to vector<8x32xf32>
    %87 = vector.extract_strided_slice %83 {offsets = [0, 96], sizes = [8, 32], strides = [1, 1]} : vector<8x128xf32> to vector<8x32xf32>
    %88 = arith.mulf %85, %73 : vector<8x32xf32>
    %89 = arith.mulf %84, %86 : vector<8x32xf32>
    %90 = arith.addf %88, %89 : vector<8x32xf32>
    %91 = math.tanh %90 : vector<8x32xf32>
    %92 = arith.mulf %87, %91 : vector<8x32xf32>
    %93 = vector.extract_strided_slice %18 {offsets = [32, 0], sizes = [8, 128], strides = [1, 1]} : vector<64x128xf32> to vector<8x128xf32>
    %cst_23 = arith.constant dense<0.000000e+00> : vector<8x128xf32>
    %94 = tpu.matmul %92, %20, %cst_23 {dimension_numbers = #tpu.dot_dimension_numbers<[1], [0], [0], [1], [0, 0, 1, 1], [], []>} : vector<8x32xf32>, vector<32x128xf32>, vector<8x128xf32> -> vector<8x128xf32>
    %95 = arith.addf %93, %94 : vector<8x128xf32>
    %96 = math.tanh %95 : vector<8x128xf32>
    %97 = vector.broadcast %8 : vector<1x128xf32> to vector<8x128xf32>
    %98 = arith.mulf %96, %97 : vector<8x128xf32>
    %99 = vector.broadcast %11 : vector<1x128xf32> to vector<8x128xf32>
    %100 = arith.addf %98, %99 : vector<8x128xf32>
    %101 = vector.extract_strided_slice %100 {offsets = [0, 0], sizes = [8, 32], strides = [1, 1]} : vector<8x128xf32> to vector<8x32xf32>
    %102 = vector.extract_strided_slice %100 {offsets = [0, 32], sizes = [8, 32], strides = [1, 1]} : vector<8x128xf32> to vector<8x32xf32>
    %103 = vector.extract_strided_slice %100 {offsets = [0, 64], sizes = [8, 32], strides = [1, 1]} : vector<8x128xf32> to vector<8x32xf32>
    %104 = vector.extract_strided_slice %100 {offsets = [0, 96], sizes = [8, 32], strides = [1, 1]} : vector<8x128xf32> to vector<8x32xf32>
    %105 = arith.mulf %102, %90 : vector<8x32xf32>
    %106 = arith.mulf %101, %103 : vector<8x32xf32>
    %107 = arith.addf %105, %106 : vector<8x32xf32>
    %108 = math.tanh %107 : vector<8x32xf32>
    %109 = arith.mulf %104, %108 : vector<8x32xf32>
    %110 = vector.extract_strided_slice %18 {offsets = [40, 0], sizes = [8, 128], strides = [1, 1]} : vector<64x128xf32> to vector<8x128xf32>
    %cst_24 = arith.constant dense<0.000000e+00> : vector<8x128xf32>
    %111 = tpu.matmul %109, %20, %cst_24 {dimension_numbers = #tpu.dot_dimension_numbers<[1], [0], [0], [1], [0, 0, 1, 1], [], []>} : vector<8x32xf32>, vector<32x128xf32>, vector<8x128xf32> -> vector<8x128xf32>
    %112 = arith.addf %110, %111 : vector<8x128xf32>
    %113 = math.tanh %112 : vector<8x128xf32>
    %114 = vector.broadcast %8 : vector<1x128xf32> to vector<8x128xf32>
    %115 = arith.mulf %113, %114 : vector<8x128xf32>
    %116 = vector.broadcast %11 : vector<1x128xf32> to vector<8x128xf32>
    %117 = arith.addf %115, %116 : vector<8x128xf32>
    %118 = vector.extract_strided_slice %117 {offsets = [0, 0], sizes = [8, 32], strides = [1, 1]} : vector<8x128xf32> to vector<8x32xf32>
    %119 = vector.extract_strided_slice %117 {offsets = [0, 32], sizes = [8, 32], strides = [1, 1]} : vector<8x128xf32> to vector<8x32xf32>
    %120 = vector.extract_strided_slice %117 {offsets = [0, 64], sizes = [8, 32], strides = [1, 1]} : vector<8x128xf32> to vector<8x32xf32>
    %121 = vector.extract_strided_slice %117 {offsets = [0, 96], sizes = [8, 32], strides = [1, 1]} : vector<8x128xf32> to vector<8x32xf32>
    %122 = arith.mulf %119, %107 : vector<8x32xf32>
    %123 = arith.mulf %118, %120 : vector<8x32xf32>
    %124 = arith.addf %122, %123 : vector<8x32xf32>
    %125 = math.tanh %124 : vector<8x32xf32>
    %126 = arith.mulf %121, %125 : vector<8x32xf32>
    %127 = vector.extract_strided_slice %18 {offsets = [48, 0], sizes = [8, 128], strides = [1, 1]} : vector<64x128xf32> to vector<8x128xf32>
    %cst_25 = arith.constant dense<0.000000e+00> : vector<8x128xf32>
    %128 = tpu.matmul %126, %20, %cst_25 {dimension_numbers = #tpu.dot_dimension_numbers<[1], [0], [0], [1], [0, 0, 1, 1], [], []>} : vector<8x32xf32>, vector<32x128xf32>, vector<8x128xf32> -> vector<8x128xf32>
    %129 = arith.addf %127, %128 : vector<8x128xf32>
    %130 = math.tanh %129 : vector<8x128xf32>
    %131 = vector.broadcast %8 : vector<1x128xf32> to vector<8x128xf32>
    %132 = arith.mulf %130, %131 : vector<8x128xf32>
    %133 = vector.broadcast %11 : vector<1x128xf32> to vector<8x128xf32>
    %134 = arith.addf %132, %133 : vector<8x128xf32>
    %135 = vector.extract_strided_slice %134 {offsets = [0, 0], sizes = [8, 32], strides = [1, 1]} : vector<8x128xf32> to vector<8x32xf32>
    %136 = vector.extract_strided_slice %134 {offsets = [0, 32], sizes = [8, 32], strides = [1, 1]} : vector<8x128xf32> to vector<8x32xf32>
    %137 = vector.extract_strided_slice %134 {offsets = [0, 64], sizes = [8, 32], strides = [1, 1]} : vector<8x128xf32> to vector<8x32xf32>
    %138 = vector.extract_strided_slice %134 {offsets = [0, 96], sizes = [8, 32], strides = [1, 1]} : vector<8x128xf32> to vector<8x32xf32>
    %139 = arith.mulf %136, %124 : vector<8x32xf32>
    %140 = arith.mulf %135, %137 : vector<8x32xf32>
    %141 = arith.addf %139, %140 : vector<8x32xf32>
    %142 = math.tanh %141 : vector<8x32xf32>
    %143 = arith.mulf %138, %142 : vector<8x32xf32>
    %144 = vector.extract_strided_slice %18 {offsets = [56, 0], sizes = [8, 128], strides = [1, 1]} : vector<64x128xf32> to vector<8x128xf32>
    %cst_26 = arith.constant dense<0.000000e+00> : vector<8x128xf32>
    %145 = tpu.matmul %143, %20, %cst_26 {dimension_numbers = #tpu.dot_dimension_numbers<[1], [0], [0], [1], [0, 0, 1, 1], [], []>} : vector<8x32xf32>, vector<32x128xf32>, vector<8x128xf32> -> vector<8x128xf32>
    %146 = arith.addf %144, %145 : vector<8x128xf32>
    %147 = math.tanh %146 : vector<8x128xf32>
    %148 = vector.broadcast %8 : vector<1x128xf32> to vector<8x128xf32>
    %149 = arith.mulf %147, %148 : vector<8x128xf32>
    %150 = vector.broadcast %11 : vector<1x128xf32> to vector<8x128xf32>
    %151 = arith.addf %149, %150 : vector<8x128xf32>
    %152 = vector.extract_strided_slice %151 {offsets = [0, 0], sizes = [8, 32], strides = [1, 1]} : vector<8x128xf32> to vector<8x32xf32>
    %153 = vector.extract_strided_slice %151 {offsets = [0, 32], sizes = [8, 32], strides = [1, 1]} : vector<8x128xf32> to vector<8x32xf32>
    %154 = vector.extract_strided_slice %151 {offsets = [0, 64], sizes = [8, 32], strides = [1, 1]} : vector<8x128xf32> to vector<8x32xf32>
    %155 = vector.extract_strided_slice %151 {offsets = [0, 96], sizes = [8, 32], strides = [1, 1]} : vector<8x128xf32> to vector<8x32xf32>
    %156 = arith.mulf %153, %141 : vector<8x32xf32>
    %157 = arith.mulf %152, %154 : vector<8x32xf32>
    %158 = arith.addf %156, %157 : vector<8x32xf32>
    %159 = math.tanh %158 : vector<8x32xf32>
    %160 = arith.mulf %155, %159 : vector<8x32xf32>
    %c0_27 = arith.constant 0 : index
    %c0_28 = arith.constant 0 : index
    %c0_29 = arith.constant 0 : index
    %161 = vector.load %arg11[%c0_27, %c0_28, %c0_29] : memref<2x8x32xf32, #tpu.memory_space<vmem>>, vector<1x8x32xf32>
    %162 = vector.shape_cast %161 : vector<1x8x32xf32> to vector<8x32xf32>
    %163 = vector.shape_cast %160 : vector<8x32xf32> to vector<1x8x32xf32>
    tpu.vector_store %arg11[%c0_27, %c0_28, %c0_29], %163 {strides = array<i32>} : memref<2x8x32xf32, #tpu.memory_space<vmem>>, vector<1x8x32xf32>,
    %c0_30 = arith.constant 0 : index
    %c0_31 = arith.constant 0 : index
    %c0_32 = arith.constant 0 : index
    %164 = vector.load %arg12[%c0_30, %c0_31, %c0_32] : memref<2x8x32xf32, #tpu.memory_space<vmem>>, vector<1x8x32xf32>
    %165 = vector.shape_cast %164 : vector<1x8x32xf32> to vector<8x32xf32>
    %166 = vector.shape_cast %158 : vector<8x32xf32> to vector<1x8x32xf32>
    tpu.vector_store %arg12[%c0_30, %c0_31, %c0_32], %166 {strides = array<i32>} : memref<2x8x32xf32, #tpu.memory_space<vmem>>, vector<1x8x32xf32>,
    %167 = tpu.concatenate %41, %58, %75, %92, %109, %126, %143, %160 in 0 : vector<8x32xf32>, vector<8x32xf32>, vector<8x32xf32>, vector<8x32xf32>, vector<8x32xf32>, vector<8x32xf32>, vector<8x32xf32>, vector<8x32xf32> -> vector<64x32xf32>
    %c0_33 = arith.constant 0 : index
    %c0_34 = arith.constant 0 : index
    %c0_35 = arith.constant 0 : index
    %168 = vector.load %arg4[%c0_33, %c0_34, %c0_35] : memref<1x32x128xf32, #tpu.memory_space<vmem>>, vector<1x32x128xf32>
    %169 = vector.shape_cast %168 : vector<1x32x128xf32> to vector<32x128xf32>
    %cst_36 = arith.constant dense<0.000000e+00> : vector<64x128xf32>
    %170 = tpu.matmul %167, %169, %cst_36 {dimension_numbers = #tpu.dot_dimension_numbers<[1], [0], [0], [1], [0, 0, 1, 1], [], []>} : vector<64x32xf32>, vector<32x128xf32>, vector<64x128xf32> -> vector<64x128xf32>
    %c0_37 = arith.constant 0 : index
    %c0_38 = arith.constant 0 : index
    %c0_39 = arith.constant 0 : index
    %171 = vector.load %arg5[%c0_37, %c0_38, %c0_39] : memref<1x1x128xf32, #tpu.memory_space<vmem>>, vector<1x1x128xf32>
    %172 = vector.shape_cast %171 : vector<1x1x128xf32> to vector<1x128xf32>
    %173 = vector.broadcast %172 : vector<1x128xf32> to vector<64x128xf32>
    %174 = arith.addf %170, %173 : vector<64x128xf32>
    %c1 = arith.constant 1 : index
    %c0_40 = arith.constant 0 : index
    %c0_41 = arith.constant 0 : index
    %175 = vector.load %arg3[%c1, %c0_40, %c0_41] : memref<2x32x128xf32, #tpu.memory_space<vmem>>, vector<1x32x128xf32>
    %176 = vector.shape_cast %175 : vector<1x32x128xf32> to vector<32x128xf32>
    %c1_42 = arith.constant 1 : index
    %c0_43 = arith.constant 0 : index
    %c0_44 = arith.constant 0 : index
    %177 = vector.load %arg6[%c1_42, %c0_43, %c0_44] : memref<2x8x32xf32, #tpu.memory_space<vmem>>, vector<1x8x32xf32>
    %178 = vector.shape_cast %177 : vector<1x8x32xf32> to vector<8x32xf32>
    %c1_45 = arith.constant 1 : index
    %c0_46 = arith.constant 0 : index
    %c0_47 = arith.constant 0 : index
    %179 = vector.load %arg7[%c1_45, %c0_46, %c0_47] : memref<2x8x32xf32, #tpu.memory_space<vmem>>, vector<1x8x32xf32>
    %180 = vector.shape_cast %179 : vector<1x8x32xf32> to vector<8x32xf32>
    %181 = vector.extract_strided_slice %174 {offsets = [0, 0], sizes = [8, 128], strides = [1, 1]} : vector<64x128xf32> to vector<8x128xf32>
    %cst_48 = arith.constant dense<0.000000e+00> : vector<8x128xf32>
    %182 = tpu.matmul %178, %176, %cst_48 {dimension_numbers = #tpu.dot_dimension_numbers<[1], [0], [0], [1], [0, 0, 1, 1], [], []>} : vector<8x32xf32>, vector<32x128xf32>, vector<8x128xf32> -> vector<8x128xf32>
    %183 = arith.addf %181, %182 : vector<8x128xf32>
    %184 = math.tanh %183 : vector<8x128xf32>
    %185 = vector.broadcast %8 : vector<1x128xf32> to vector<8x128xf32>
    %186 = arith.mulf %184, %185 : vector<8x128xf32>
    %187 = vector.broadcast %11 : vector<1x128xf32> to vector<8x128xf32>
    %188 = arith.addf %186, %187 : vector<8x128xf32>
    %189 = vector.extract_strided_slice %188 {offsets = [0, 0], sizes = [8, 32], strides = [1, 1]} : vector<8x128xf32> to vector<8x32xf32>
    %190 = vector.extract_strided_slice %188 {offsets = [0, 32], sizes = [8, 32], strides = [1, 1]} : vector<8x128xf32> to vector<8x32xf32>
    %191 = vector.extract_strided_slice %188 {offsets = [0, 64], sizes = [8, 32], strides = [1, 1]} : vector<8x128xf32> to vector<8x32xf32>
    %192 = vector.extract_strided_slice %188 {offsets = [0, 96], sizes = [8, 32], strides = [1, 1]} : vector<8x128xf32> to vector<8x32xf32>
    %193 = arith.mulf %190, %180 : vector<8x32xf32>
    %194 = arith.mulf %189, %191 : vector<8x32xf32>
    %195 = arith.addf %193, %194 : vector<8x32xf32>
    %196 = math.tanh %195 : vector<8x32xf32>
    %197 = arith.mulf %192, %196 : vector<8x32xf32>
    %198 = vector.extract_strided_slice %174 {offsets = [8, 0], sizes = [8, 128], strides = [1, 1]} : vector<64x128xf32> to vector<8x128xf32>
    %cst_49 = arith.constant dense<0.000000e+00> : vector<8x128xf32>
    %199 = tpu.matmul %197, %176, %cst_49 {dimension_numbers = #tpu.dot_dimension_numbers<[1], [0], [0], [1], [0, 0, 1, 1], [], []>} : vector<8x32xf32>, vector<32x128xf32>, vector<8x128xf32> -> vector<8x128xf32>
    %200 = arith.addf %198, %199 : vector<8x128xf32>
    %201 = math.tanh %200 : vector<8x128xf32>
    %202 = vector.broadcast %8 : vector<1x128xf32> to vector<8x128xf32>
    %203 = arith.mulf %201, %202 : vector<8x128xf32>
    %204 = vector.broadcast %11 : vector<1x128xf32> to vector<8x128xf32>
    %205 = arith.addf %203, %204 : vector<8x128xf32>
    %206 = vector.extract_strided_slice %205 {offsets = [0, 0], sizes = [8, 32], strides = [1, 1]} : vector<8x128xf32> to vector<8x32xf32>
    %207 = vector.extract_strided_slice %205 {offsets = [0, 32], sizes = [8, 32], strides = [1, 1]} : vector<8x128xf32> to vector<8x32xf32>
    %208 = vector.extract_strided_slice %205 {offsets = [0, 64], sizes = [8, 32], strides = [1, 1]} : vector<8x128xf32> to vector<8x32xf32>
    %209 = vector.extract_strided_slice %205 {offsets = [0, 96], sizes = [8, 32], strides = [1, 1]} : vector<8x128xf32> to vector<8x32xf32>
    %210 = arith.mulf %207, %195 : vector<8x32xf32>
    %211 = arith.mulf %206, %208 : vector<8x32xf32>
    %212 = arith.addf %210, %211 : vector<8x32xf32>
    %213 = math.tanh %212 : vector<8x32xf32>
    %214 = arith.mulf %209, %213 : vector<8x32xf32>
    %215 = vector.extract_strided_slice %174 {offsets = [16, 0], sizes = [8, 128], strides = [1, 1]} : vector<64x128xf32> to vector<8x128xf32>
    %cst_50 = arith.constant dense<0.000000e+00> : vector<8x128xf32>
    %216 = tpu.matmul %214, %176, %cst_50 {dimension_numbers = #tpu.dot_dimension_numbers<[1], [0], [0], [1], [0, 0, 1, 1], [], []>} : vector<8x32xf32>, vector<32x128xf32>, vector<8x128xf32> -> vector<8x128xf32>
    %217 = arith.addf %215, %216 : vector<8x128xf32>
    %218 = math.tanh %217 : vector<8x128xf32>
    %219 = vector.broadcast %8 : vector<1x128xf32> to vector<8x128xf32>
    %220 = arith.mulf %218, %219 : vector<8x128xf32>
    %221 = vector.broadcast %11 : vector<1x128xf32> to vector<8x128xf32>
    %222 = arith.addf %220, %221 : vector<8x128xf32>
    %223 = vector.extract_strided_slice %222 {offsets = [0, 0], sizes = [8, 32], strides = [1, 1]} : vector<8x128xf32> to vector<8x32xf32>
    %224 = vector.extract_strided_slice %222 {offsets = [0, 32], sizes = [8, 32], strides = [1, 1]} : vector<8x128xf32> to vector<8x32xf32>
    %225 = vector.extract_strided_slice %222 {offsets = [0, 64], sizes = [8, 32], strides = [1, 1]} : vector<8x128xf32> to vector<8x32xf32>
    %226 = vector.extract_strided_slice %222 {offsets = [0, 96], sizes = [8, 32], strides = [1, 1]} : vector<8x128xf32> to vector<8x32xf32>
    %227 = arith.mulf %224, %212 : vector<8x32xf32>
    %228 = arith.mulf %223, %225 : vector<8x32xf32>
    %229 = arith.addf %227, %228 : vector<8x32xf32>
    %230 = math.tanh %229 : vector<8x32xf32>
    %231 = arith.mulf %226, %230 : vector<8x32xf32>
    %232 = vector.extract_strided_slice %174 {offsets = [24, 0], sizes = [8, 128], strides = [1, 1]} : vector<64x128xf32> to vector<8x128xf32>
    %cst_51 = arith.constant dense<0.000000e+00> : vector<8x128xf32>
    %233 = tpu.matmul %231, %176, %cst_51 {dimension_numbers = #tpu.dot_dimension_numbers<[1], [0], [0], [1], [0, 0, 1, 1], [], []>} : vector<8x32xf32>, vector<32x128xf32>, vector<8x128xf32> -> vector<8x128xf32>
    %234 = arith.addf %232, %233 : vector<8x128xf32>
    %235 = math.tanh %234 : vector<8x128xf32>
    %236 = vector.broadcast %8 : vector<1x128xf32> to vector<8x128xf32>
    %237 = arith.mulf %235, %236 : vector<8x128xf32>
    %238 = vector.broadcast %11 : vector<1x128xf32> to vector<8x128xf32>
    %239 = arith.addf %237, %238 : vector<8x128xf32>
    %240 = vector.extract_strided_slice %239 {offsets = [0, 0], sizes = [8, 32], strides = [1, 1]} : vector<8x128xf32> to vector<8x32xf32>
    %241 = vector.extract_strided_slice %239 {offsets = [0, 32], sizes = [8, 32], strides = [1, 1]} : vector<8x128xf32> to vector<8x32xf32>
    %242 = vector.extract_strided_slice %239 {offsets = [0, 64], sizes = [8, 32], strides = [1, 1]} : vector<8x128xf32> to vector<8x32xf32>
    %243 = vector.extract_strided_slice %239 {offsets = [0, 96], sizes = [8, 32], strides = [1, 1]} : vector<8x128xf32> to vector<8x32xf32>
    %244 = arith.mulf %241, %229 : vector<8x32xf32>
    %245 = arith.mulf %240, %242 : vector<8x32xf32>
    %246 = arith.addf %244, %245 : vector<8x32xf32>
    %247 = math.tanh %246 : vector<8x32xf32>
    %248 = arith.mulf %243, %247 : vector<8x32xf32>
    %249 = vector.extract_strided_slice %174 {offsets = [32, 0], sizes = [8, 128], strides = [1, 1]} : vector<64x128xf32> to vector<8x128xf32>
    %cst_52 = arith.constant dense<0.000000e+00> : vector<8x128xf32>
    %250 = tpu.matmul %248, %176, %cst_52 {dimension_numbers = #tpu.dot_dimension_numbers<[1], [0], [0], [1], [0, 0, 1, 1], [], []>} : vector<8x32xf32>, vector<32x128xf32>, vector<8x128xf32> -> vector<8x128xf32>
    %251 = arith.addf %249, %250 : vector<8x128xf32>
    %252 = math.tanh %251 : vector<8x128xf32>
    %253 = vector.broadcast %8 : vector<1x128xf32> to vector<8x128xf32>
    %254 = arith.mulf %252, %253 : vector<8x128xf32>
    %255 = vector.broadcast %11 : vector<1x128xf32> to vector<8x128xf32>
    %256 = arith.addf %254, %255 : vector<8x128xf32>
    %257 = vector.extract_strided_slice %256 {offsets = [0, 0], sizes = [8, 32], strides = [1, 1]} : vector<8x128xf32> to vector<8x32xf32>
    %258 = vector.extract_strided_slice %256 {offsets = [0, 32], sizes = [8, 32], strides = [1, 1]} : vector<8x128xf32> to vector<8x32xf32>
    %259 = vector.extract_strided_slice %256 {offsets = [0, 64], sizes = [8, 32], strides = [1, 1]} : vector<8x128xf32> to vector<8x32xf32>
    %260 = vector.extract_strided_slice %256 {offsets = [0, 96], sizes = [8, 32], strides = [1, 1]} : vector<8x128xf32> to vector<8x32xf32>
    %261 = arith.mulf %258, %246 : vector<8x32xf32>
    %262 = arith.mulf %257, %259 : vector<8x32xf32>
    %263 = arith.addf %261, %262 : vector<8x32xf32>
    %264 = math.tanh %263 : vector<8x32xf32>
    %265 = arith.mulf %260, %264 : vector<8x32xf32>
    %266 = vector.extract_strided_slice %174 {offsets = [40, 0], sizes = [8, 128], strides = [1, 1]} : vector<64x128xf32> to vector<8x128xf32>
    %cst_53 = arith.constant dense<0.000000e+00> : vector<8x128xf32>
    %267 = tpu.matmul %265, %176, %cst_53 {dimension_numbers = #tpu.dot_dimension_numbers<[1], [0], [0], [1], [0, 0, 1, 1], [], []>} : vector<8x32xf32>, vector<32x128xf32>, vector<8x128xf32> -> vector<8x128xf32>
    %268 = arith.addf %266, %267 : vector<8x128xf32>
    %269 = math.tanh %268 : vector<8x128xf32>
    %270 = vector.broadcast %8 : vector<1x128xf32> to vector<8x128xf32>
    %271 = arith.mulf %269, %270 : vector<8x128xf32>
    %272 = vector.broadcast %11 : vector<1x128xf32> to vector<8x128xf32>
    %273 = arith.addf %271, %272 : vector<8x128xf32>
    %274 = vector.extract_strided_slice %273 {offsets = [0, 0], sizes = [8, 32], strides = [1, 1]} : vector<8x128xf32> to vector<8x32xf32>
    %275 = vector.extract_strided_slice %273 {offsets = [0, 32], sizes = [8, 32], strides = [1, 1]} : vector<8x128xf32> to vector<8x32xf32>
    %276 = vector.extract_strided_slice %273 {offsets = [0, 64], sizes = [8, 32], strides = [1, 1]} : vector<8x128xf32> to vector<8x32xf32>
    %277 = vector.extract_strided_slice %273 {offsets = [0, 96], sizes = [8, 32], strides = [1, 1]} : vector<8x128xf32> to vector<8x32xf32>
    %278 = arith.mulf %275, %263 : vector<8x32xf32>
    %279 = arith.mulf %274, %276 : vector<8x32xf32>
    %280 = arith.addf %278, %279 : vector<8x32xf32>
    %281 = math.tanh %280 : vector<8x32xf32>
    %282 = arith.mulf %277, %281 : vector<8x32xf32>
    %283 = vector.extract_strided_slice %174 {offsets = [48, 0], sizes = [8, 128], strides = [1, 1]} : vector<64x128xf32> to vector<8x128xf32>
    %cst_54 = arith.constant dense<0.000000e+00> : vector<8x128xf32>
    %284 = tpu.matmul %282, %176, %cst_54 {dimension_numbers = #tpu.dot_dimension_numbers<[1], [0], [0], [1], [0, 0, 1, 1], [], []>} : vector<8x32xf32>, vector<32x128xf32>, vector<8x128xf32> -> vector<8x128xf32>
    %285 = arith.addf %283, %284 : vector<8x128xf32>
    %286 = math.tanh %285 : vector<8x128xf32>
    %287 = vector.broadcast %8 : vector<1x128xf32> to vector<8x128xf32>
    %288 = arith.mulf %286, %287 : vector<8x128xf32>
    %289 = vector.broadcast %11 : vector<1x128xf32> to vector<8x128xf32>
    %290 = arith.addf %288, %289 : vector<8x128xf32>
    %291 = vector.extract_strided_slice %290 {offsets = [0, 0], sizes = [8, 32], strides = [1, 1]} : vector<8x128xf32> to vector<8x32xf32>
    %292 = vector.extract_strided_slice %290 {offsets = [0, 32], sizes = [8, 32], strides = [1, 1]} : vector<8x128xf32> to vector<8x32xf32>
    %293 = vector.extract_strided_slice %290 {offsets = [0, 64], sizes = [8, 32], strides = [1, 1]} : vector<8x128xf32> to vector<8x32xf32>
    %294 = vector.extract_strided_slice %290 {offsets = [0, 96], sizes = [8, 32], strides = [1, 1]} : vector<8x128xf32> to vector<8x32xf32>
    %295 = arith.mulf %292, %280 : vector<8x32xf32>
    %296 = arith.mulf %291, %293 : vector<8x32xf32>
    %297 = arith.addf %295, %296 : vector<8x32xf32>
    %298 = math.tanh %297 : vector<8x32xf32>
    %299 = arith.mulf %294, %298 : vector<8x32xf32>
    %300 = vector.extract_strided_slice %174 {offsets = [56, 0], sizes = [8, 128], strides = [1, 1]} : vector<64x128xf32> to vector<8x128xf32>
    %cst_55 = arith.constant dense<0.000000e+00> : vector<8x128xf32>
    %301 = tpu.matmul %299, %176, %cst_55 {dimension_numbers = #tpu.dot_dimension_numbers<[1], [0], [0], [1], [0, 0, 1, 1], [], []>} : vector<8x32xf32>, vector<32x128xf32>, vector<8x128xf32> -> vector<8x128xf32>
    %302 = arith.addf %300, %301 : vector<8x128xf32>
    %303 = math.tanh %302 : vector<8x128xf32>
    %304 = vector.broadcast %8 : vector<1x128xf32> to vector<8x128xf32>
    %305 = arith.mulf %303, %304 : vector<8x128xf32>
    %306 = vector.broadcast %11 : vector<1x128xf32> to vector<8x128xf32>
    %307 = arith.addf %305, %306 : vector<8x128xf32>
    %308 = vector.extract_strided_slice %307 {offsets = [0, 0], sizes = [8, 32], strides = [1, 1]} : vector<8x128xf32> to vector<8x32xf32>
    %309 = vector.extract_strided_slice %307 {offsets = [0, 32], sizes = [8, 32], strides = [1, 1]} : vector<8x128xf32> to vector<8x32xf32>
    %310 = vector.extract_strided_slice %307 {offsets = [0, 64], sizes = [8, 32], strides = [1, 1]} : vector<8x128xf32> to vector<8x32xf32>
    %311 = vector.extract_strided_slice %307 {offsets = [0, 96], sizes = [8, 32], strides = [1, 1]} : vector<8x128xf32> to vector<8x32xf32>
    %312 = arith.mulf %309, %297 : vector<8x32xf32>
    %313 = arith.mulf %308, %310 : vector<8x32xf32>
    %314 = arith.addf %312, %313 : vector<8x32xf32>
    %315 = math.tanh %314 : vector<8x32xf32>
    %316 = arith.mulf %311, %315 : vector<8x32xf32>
    %c1_56 = arith.constant 1 : index
    %c0_57 = arith.constant 0 : index
    %c0_58 = arith.constant 0 : index
    %317 = vector.load %arg11[%c1_56, %c0_57, %c0_58] : memref<2x8x32xf32, #tpu.memory_space<vmem>>, vector<1x8x32xf32>
    %318 = vector.shape_cast %317 : vector<1x8x32xf32> to vector<8x32xf32>
    %319 = vector.shape_cast %316 : vector<8x32xf32> to vector<1x8x32xf32>
    tpu.vector_store %arg11[%c1_56, %c0_57, %c0_58], %319 {strides = array<i32>} : memref<2x8x32xf32, #tpu.memory_space<vmem>>, vector<1x8x32xf32>,
    %c1_59 = arith.constant 1 : index
    %c0_60 = arith.constant 0 : index
    %c0_61 = arith.constant 0 : index
    %320 = vector.load %arg12[%c1_59, %c0_60, %c0_61] : memref<2x8x32xf32, #tpu.memory_space<vmem>>, vector<1x8x32xf32>
    %321 = vector.shape_cast %320 : vector<1x8x32xf32> to vector<8x32xf32>
    %322 = vector.shape_cast %314 : vector<8x32xf32> to vector<1x8x32xf32>
    tpu.vector_store %arg12[%c1_59, %c0_60, %c0_61], %322 {strides = array<i32>} : memref<2x8x32xf32, #tpu.memory_space<vmem>>, vector<1x8x32xf32>,
    %c0_62 = arith.constant 0 : index
    %c0_63 = arith.constant 0 : index
    %323 = vector.load %arg8[%c0_62, %c0_63] : memref<32x4xf32, #tpu.memory_space<vmem>>, vector<32x4xf32>
    %cst_64 = arith.constant dense<0.000000e+00> : vector<8x4xf32>
    %324 = tpu.matmul %316, %323, %cst_64 {dimension_numbers = #tpu.dot_dimension_numbers<[1], [0], [0], [1], [0, 0, 1, 1], [], []>} : vector<8x32xf32>, vector<32x4xf32>, vector<8x4xf32> -> vector<8x4xf32>
    %c0_65 = arith.constant 0 : index
    %c0_66 = arith.constant 0 : index
    %325 = vector.load %arg9[%c0_65, %c0_66] : memref<1x4xf32, #tpu.memory_space<vmem>>, vector<1x4xf32>
    %326 = vector.broadcast %325 : vector<1x4xf32> to vector<8x4xf32>
    %327 = arith.addf %324, %326 : vector<8x4xf32>
    %c0_67 = arith.constant 0 : index
    %c0_68 = arith.constant 0 : index
    %328 = vector.load %arg10[%c0_67, %c0_68] : memref<8x4xf32, #tpu.memory_space<vmem>>, vector<8x4xf32>
    tpu.vector_store %arg10[%c0_67, %c0_68], %327 {strides = array<i32>} : memref<8x4xf32, #tpu.memory_space<vmem>>, vector<8x4xf32>,
    return
  }
}

</mosaic_0001>

<llo_original>
// kernel: lstm_regressor_forward.1
$region0: #{lstm_regressor_forward.1}
  #allocation0 [shape = 'u32[]', space=smem, size = 0x4, offset = 0x4, fixed_abs, tag = 'smem constant byte address 0x4 - core index']
  #allocation1 [shape = 'u32[72,128]{1,0:T(1,128)}', space=vmem, size = 0x9000, scoped, tag = 'internal scratch']
  %s0 = inlined_call_operand.vmem [shape: f32[8,8,16], index: 0, kind: input, shape index: {}]
  %s1 = inlined_call_operand.vmem [shape: f32[16,128], index: 1, kind: input, shape index: {}]
  %s2 = inlined_call_operand.vmem [shape: f32[1,128], index: 2, kind: input, shape index: {}]
  %s3 = inlined_call_operand.vmem [shape: f32[2,32,128], index: 3, kind: input, shape index: {}]
  %s4 = inlined_call_operand.vmem [shape: f32[1,32,128], index: 4, kind: input, shape index: {}]
  %s5 = inlined_call_operand.vmem [shape: f32[1,1,128], index: 5, kind: input, shape index: {}]
  %s6 = inlined_call_operand.vmem [shape: f32[2,8,32], index: 6, kind: input, shape index: {}]
  %s7 = inlined_call_operand.vmem [shape: f32[2,8,32], index: 7, kind: input, shape index: {}]
  %s8 = inlined_call_operand.vmem [shape: f32[32,4], index: 8, kind: input, shape index: {}]
  %s9 = inlined_call_operand.vmem [shape: f32[1,4], index: 9, kind: input, shape index: {}]
  %s10 = inlined_call_operand.vmem [shape: f32[8,4], index: 10, kind: output, shape index: {0}]
  %s11 = inlined_call_operand.vmem [shape: f32[2,8,32], index: 11, kind: output, shape index: {1}]
  %s12 = inlined_call_operand.vmem [shape: f32[2,8,32], index: 12, kind: output, shape index: {2}]
  %13 = xla_tuple %s10, %s11, %s12
  %s14 = sld [smem:[#allocation0]]
  $region66: #{lstm_regressor_forward.1} parent=0
    _
  %s16 = ssub.s32 1, %s14
  %s17 = scalar_select 0, %s16, %s14
  // Predicated region
  $region2: #{lstm_regressor_forward.1} parent=0 // pred_check
    _
  $region3: #{lstm_regressor_forward.1} parent=0 // pred_check_branch
    %19 = sbr.rel (0) target = $region5
  $region4: #{lstm_regressor_forward.1} parent=0 // pred_region
    _
  $region5: #{lstm_regressor_forward.1} parent=0 // pred_fallthru
    _
  // Predicated region
  $region6: #{lstm_regressor_forward.1} parent=0 // pred_check
    _
  $region7: #{lstm_regressor_forward.1} parent=0 // pred_check_branch
    %21 = sbr.rel (0) target = $region9
  $region8: #{lstm_regressor_forward.1} parent=0 // pred_region
    _
  $region9: #{lstm_regressor_forward.1} parent=0 // pred_fallthru
    _
  // Predicated region
  $region10: #{lstm_regressor_forward.1} parent=0 // pred_check
    _
  $region11: #{lstm_regressor_forward.1} parent=0 // pred_check_branch
    %23 = sbr.rel (0) target = $region13
  $region12: #{lstm_regressor_forward.1} parent=0 // pred_region
    _
  $region13: #{lstm_regressor_forward.1} parent=0 // pred_fallthru
    _
  // Predicated region
  $region14: #{lstm_regressor_forward.1} parent=0 // pred_check
    _
  $region15: #{lstm_regressor_forward.1} parent=0 // pred_check_branch
    %25 = sbr.rel (0) target = $region17
  $region16: #{lstm_regressor_forward.1} parent=0 // pred_region
    _
  $region17: #{lstm_regressor_forward.1} parent=0 // pred_fallthru
    _
  // Predicated region
  $region18: #{lstm_regressor_forward.1} parent=0 // pred_check
    _
  $region19: #{lstm_regressor_forward.1} parent=0 // pred_check_branch
    %27 = sbr.rel (0) target = $region21
  $region20: #{lstm_regressor_forward.1} parent=0 // pred_region
    _
  $region21: #{lstm_regressor_forward.1} parent=0 // pred_fallthru
    _
  // Predicated region
  $region22: #{lstm_regressor_forward.1} parent=0 // pred_check
    _
  $region23: #{lstm_regressor_forward.1} parent=0 // pred_check_branch
    %29 = sbr.rel (0) target = $region25
  $region24: #{lstm_regressor_forward.1} parent=0 // pred_region
    _
  $region25: #{lstm_regressor_forward.1} parent=0 // pred_fallthru
    _
  // Predicated region
  $region26: #{lstm_regressor_forward.1} parent=0 // pred_check
    _
  $region27: #{lstm_regressor_forward.1} parent=0 // pred_check_branch
    %31 = sbr.rel (0) target = $region29
  $region28: #{lstm_regressor_forward.1} parent=0 // pred_region
    _
  $region29: #{lstm_regressor_forward.1} parent=0 // pred_fallthru
    _
  // Predicated region
  $region30: #{lstm_regressor_forward.1} parent=0 // pred_check
    _
  $region31: #{lstm_regressor_forward.1} parent=0 // pred_check_branch
    %33 = sbr.rel (0) target = $region33
  $region32: #{lstm_regressor_forward.1} parent=0 // pred_region
    _
  $region33: #{lstm_regressor_forward.1} parent=0 // pred_fallthru
    _
  // Predicated region
  $region34: #{lstm_regressor_forward.1} parent=0 // pred_check
    _
  $region35: #{lstm_regressor_forward.1} parent=0 // pred_check_branch
    %35 = sbr.rel (0) target = $region37
  $region36: #{lstm_regressor_forward.1} parent=0 // pred_region
    _
  $region37: #{lstm_regressor_forward.1} parent=0 // pred_fallthru
    _
  // Predicated region
  $region38: #{lstm_regressor_forward.1} parent=0 // pred_check
    _
  $region39: #{lstm_regressor_forward.1} parent=0 // pred_check_branch
    %37 = sbr.rel (0) target = $region41
  $region40: #{lstm_regressor_forward.1} parent=0 // pred_region
    _
  $region41: #{lstm_regressor_forward.1} parent=0 // pred_fallthru
    _
  %v38 = vlaneseq
  %v39 = vand.u32 %v38, 127
  %vm40 = vcmp.ge.s32.totalorder %v39, 64
  %vm41 = vcmp.lt.s32.totalorder %v39, 96
  %vm42 = vmand %vm40, %vm41
  %v43 = vsel %vm42, 1.0, 0.5
  %v44 = vsel %vm42, 0.0, 0.5
  %v45 = vld [vmem:[%s0] sm:$0xff]
  %v46 = vld [vmem:[%s0 + $0x8] sm:$0xff]
  %v47 = vld [vmem:[%s0 + $0x10] sm:$0xff]
  %v48 = vld [vmem:[%s0 + $0x18] sm:$0xff]
  %v49 = vld [vmem:[%s0 + $0x20] sm:$0xff]
  %v50 = vld [vmem:[%s0 + $0x28] sm:$0xff]
  %v51 = vld [vmem:[%s0 + $0x30] sm:$0xff]
  %v52 = vld [vmem:[%s0 + $0x38] sm:$0xff]
  %v53 = vld [vmem:[%s1] sm:$0xff]
  %v54 = vld [vmem:[%s1 + $0x8] sm:$0xff]
  %v55 = vld [vmem:[%s2] sm:$0x1]
  %v57 = vperm.slane %v55, 0
  %vm59 = vcmask 130048
  %v61 = vsel %vm59, %v45, 0
  %v64 = vsel %vm59, %v46, 0
  %v67 = vsel %vm59, %v47, 0
  %v70 = vsel %vm59, %v48, 0
  %v73 = vsel %vm59, %v49, 0
  %v76 = vsel %vm59, %v50, 0
  %v79 = vsel %vm59, %v51, 0
  %v82 = vsel %vm59, %v52, 0
  %84 = vmatpush.msra.mxu0 0.0
  %85 = vmatpush.msra.mxu0 0.0
  %86 = vmatpush.msra.mxu0 0.0
  %87 = vmatpush.msra.mxu0 0.0
  %88 = vmatpush.msra.mxu0 0.0
  %89 = vmatpush.msra.mxu0 0.0
  %90 = vmatpush.msra.mxu0 0.0
  %91 = vmatpush.msra.mxu0 0.0
  %92 = vmatpush.msra.mxu0 0.0
  %93 = vmatpush.msra.mxu0 0.0
  %94 = vmatpush.msra.mxu0 0.0
  %95 = vmatpush.msra.mxu0 0.0
  %96 = vmatpush.msra.mxu0 0.0
  %97 = vmatpush.msra.mxu0 0.0
  %98 = vmatpush.msra.mxu0 %v54
  %99 = vmatpush.msra.mxu0 %v53
  %100 = vmatmul.f32.gmra.mxu0 %v61
  %v101 = vpop.f32.mrf.mxu0
  %v102 = vadd.f32 %v57, %v101
  %103 = vmatmul.f32.gmra.mxu0 %v64
  %v104 = vpop.f32.mrf.mxu0
  %v105 = vadd.f32 %v57, %v104
  %106 = vmatmul.f32.gmra.mxu0 %v67
  %v107 = vpop.f32.mrf.mxu0
  %v108 = vadd.f32 %v57, %v107
  %109 = vmatmul.f32.gmra.mxu0 %v70
  %v110 = vpop.f32.mrf.mxu0
  %v111 = vadd.f32 %v57, %v110
  %112 = vmatmul.f32.gmra.mxu0 %v73
  %v113 = vpop.f32.mrf.mxu0
  %v114 = vadd.f32 %v57, %v113
  %115 = vmatmul.f32.gmra.mxu0 %v76
  %v116 = vpop.f32.mrf.mxu0
  %v117 = vadd.f32 %v57, %v116
  %118 = vmatmul.f32.gmra.mxu0 %v79
  %v119 = vpop.f32.mrf.mxu0
  %v120 = vadd.f32 %v57, %v119
  %121 = vmatmul.f32.gmra.mxu0 %v82
  %v122 = vpop.f32.mrf.mxu0
  %v123 = vadd.f32 %v57, %v122
  %124 = vdwg.mxu0
  %v125 = vld [vmem:[%s3] sm:$0xff]
  %v126 = vld [vmem:[%s3 + $0x8] sm:$0xff]
  %v127 = vld [vmem:[%s3 + $0x10] sm:$0xff]
  %v128 = vld [vmem:[%s3 + $0x18] sm:$0xff]
  %v129 = vld [vmem:[%s6] sm:$0xff]
  %v130 = vld [vmem:[%s7] sm:$0xff]
  %vm131 = vcmask 261120
  %v133 = vsel %vm131, %v129, 0
  %135 = vmatpush.msra.mxu0 0.0
  %136 = vmatpush.msra.mxu0 0.0
  %137 = vmatpush.msra.mxu0 0.0
  %138 = vmatpush.msra.mxu0 0.0
  %139 = vmatpush.msra.mxu0 0.0
  %140 = vmatpush.msra.mxu0 0.0
  %141 = vmatpush.msra.mxu0 0.0
  %142 = vmatpush.msra.mxu0 0.0
  %143 = vmatpush.msra.mxu0 0.0
  %144 = vmatpush.msra.mxu0 0.0
  %145 = vmatpush.msra.mxu0 0.0
  %146 = vmatpush.msra.mxu0 0.0
  %147 = vmatpush.msra.mxu0 %v128
  %148 = vmatpush.msra.mxu0 %v127
  %149 = vmatpush.msra.mxu0 %v126
  %150 = vmatpush.msra.mxu0 %v125
  %151 = vmatmul.f32.gmra.mxu0 %v133
  %v152 = vpop.f32.mrf.mxu0
  %v153 = vadd.f32 0.0, %v152
  %154 = vdwg.mxu0
  %v155 = vadd.f32 %v102, %v153
  %v156 = vtanh.pop %v155
  %v157 = vmul.f32 %v156, %v43
  %v158 = vadd.f32 %v157, %v44
  %160 = vrot.lane.b32.xlu0 %v130, 32
  %v161 = vpop.permute.xlu0 %160
  %v163 = vmul.f32 %v158, %v161
  %165 = vrot.lane.b32.xlu0 %v158, 64
  %v166 = vpop.permute.xlu0 %165
  %v168 = vmul.f32 %v158, %v166
  %170 = vrot.lane.b32.xlu0 %v168, 32
  %v171 = vpop.permute.xlu0 %170
  %v173 = vadd.f32 %v163, %v171
  %v174 = vtanh.pop %v173
  %176 = vrot.lane.b32.xlu0 %v174, 64
  %v177 = vpop.permute.xlu0 %176
  %v179 = vmul.f32 %v158, %v177
  %181 = vrot.lane.b32.xlu0 %v179, 32
  %v182 = vpop.permute.xlu0 %181
  %v183 = vsel %vm131, %v182, 0
  %185 = vmatpush.msra.mxu0 0.0
  %186 = vmatpush.msra.mxu0 0.0
  %187 = vmatpush.msra.mxu0 0.0
  %188 = vmatpush.msra.mxu0 0.0
  %189 = vmatpush.msra.mxu0 0.0
  %190 = vmatpush.msra.mxu0 0.0
  %191 = vmatpush.msra.mxu0 0.0
  %192 = vmatpush.msra.mxu0 0.0
  %193 = vmatpush.msra.mxu0 0.0
  %194 = vmatpush.msra.mxu0 0.0
  %195 = vmatpush.msra.mxu0 0.0
  %196 = vmatpush.msra.mxu0 0.0
  %197 = vmatpush.msra.mxu0 %v128
  %198 = vmatpush.msra.mxu0 %v127
  %199 = vmatpush.msra.mxu0 %v126
  %200 = vmatpush.msra.mxu0 %v125
  %201 = vmatmul.f32.gmra.mxu0 %v183
  %v202 = vpop.f32.mrf.mxu0
  %v203 = vadd.f32 0.0, %v202
  %204 = vdwg.mxu0
  %v205 = vadd.f32 %v105, %v203
  %v206 = vtanh.pop %v205
  %v207 = vmul.f32 %v206, %v43
  %v208 = vadd.f32 %v207, %v44
  %v209 = vmul.f32 %v208, %v173
  %211 = vrot.lane.b32.xlu0 %v208, 64
  %v212 = vpop.permute.xlu0 %211
  %v214 = vmul.f32 %v208, %v212
  %216 = vrot.lane.b32.xlu0 %v214, 32
  %v217 = vpop.permute.xlu0 %216
  %v219 = vadd.f32 %v209, %v217
  %v220 = vtanh.pop %v219
  %222 = vrot.lane.b32.xlu0 %v220, 64
  %v223 = vpop.permute.xlu0 %222
  %v225 = vmul.f32 %v208, %v223
  %227 = vrot.lane.b32.xlu0 %v225, 32
  %v228 = vpop.permute.xlu0 %227
  %v229 = vsel %vm131, %v228, 0
  %231 = vmatpush.msra.mxu0 0.0
  %232 = vmatpush.msra.mxu0 0.0
  %233 = vmatpush.msra.mxu0 0.0
  %234 = vmatpush.msra.mxu0 0.0
  %235 = vmatpush.msra.mxu0 0.0
  %236 = vmatpush.msra.mxu0 0.0
  %237 = vmatpush.msra.mxu0 0.0
  %238 = vmatpush.msra.mxu0 0.0
  %239 = vmatpush.msra.mxu0 0.0
  %240 = vmatpush.msra.mxu0 0.0
  %241 = vmatpush.msra.mxu0 0.0
  %242 = vmatpush.msra.mxu0 0.0
  %243 = vmatpush.msra.mxu0 %v128
  %244 = vmatpush.msra.mxu0 %v127
  %245 = vmatpush.msra.mxu0 %v126
  %246 = vmatpush.msra.mxu0 %v125
  %247 = vmatmul.f32.gmra.mxu0 %v229
  %v248 = vpop.f32.mrf.mxu0
  %v249 = vadd.f32 0.0, %v248
  %250 = vdwg.mxu0
  %v251 = vadd.f32 %v108, %v249
  %v252 = vtanh.pop %v251
  %v253 = vmul.f32 %v252, %v43
  %v254 = vadd.f32 %v253, %v44
  %v255 = vmul.f32 %v254, %v219
  %257 = vrot.lane.b32.xlu0 %v254, 64
  %v258 = vpop.permute.xlu0 %257
  %v260 = vmul.f32 %v254, %v258
  %262 = vrot.lane.b32.xlu0 %v260, 32
  %v263 = vpop.permute.xlu0 %262
  %v265 = vadd.f32 %v255, %v263
  %v266 = vtanh.pop %v265
  %268 = vrot.lane.b32.xlu0 %v266, 64
  %v269 = vpop.permute.xlu0 %268
  %v271 = vmul.f32 %v254, %v269
  %273 = vrot.lane.b32.xlu0 %v271, 32
  %v274 = vpop.permute.xlu0 %273
  %v275 = vsel %vm131, %v274, 0
  %277 = vmatpush.msra.mxu0 0.0
  %278 = vmatpush.msra.mxu0 0.0
  %279 = vmatpush.msra.mxu0 0.0
  %280 = vmatpush.msra.mxu0 0.0
  %281 = vmatpush.msra.mxu0 0.0
  %282 = vmatpush.msra.mxu0 0.0
  %283 = vmatpush.msra.mxu0 0.0
  %284 = vmatpush.msra.mxu0 0.0
  %285 = vmatpush.msra.mxu0 0.0
  %286 = vmatpush.msra.mxu0 0.0
  %287 = vmatpush.msra.mxu0 0.0
  %288 = vmatpush.msra.mxu0 0.0
  %289 = vmatpush.msra.mxu0 %v128
  %290 = vmatpush.msra.mxu0 %v127
  %291 = vmatpush.msra.mxu0 %v126
  %292 = vmatpush.msra.mxu0 %v125
  %293 = vmatmul.f32.gmra.mxu0 %v275
  %v294 = vpop.f32.mrf.mxu0
  %v295 = vadd.f32 0.0, %v294
  %296 = vdwg.mxu0
  %v297 = vadd.f32 %v111, %v295
  %v298 = vtanh.pop %v297
  %v299 = vmul.f32 %v298, %v43
  %v300 = vadd.f32 %v299, %v44
  %v301 = vmul.f32 %v300, %v265
  %303 = vrot.lane.b32.xlu0 %v300, 64
  %v304 = vpop.permute.xlu0 %303
  %v306 = vmul.f32 %v300, %v304
  %308 = vrot.lane.b32.xlu0 %v306, 32
  %v309 = vpop.permute.xlu0 %308
  %v311 = vadd.f32 %v301, %v309
  %v312 = vtanh.pop %v311
  %314 = vrot.lane.b32.xlu0 %v312, 64
  %v315 = vpop.permute.xlu0 %314
  %v317 = vmul.f32 %v300, %v315
  %319 = vrot.lane.b32.xlu0 %v317, 32
  %v320 = vpop.permute.xlu0 %319
  %v321 = vsel %vm131, %v320, 0
  %323 = vmatpush.msra.mxu0 0.0
  %324 = vmatpush.msra.mxu0 0.0
  %325 = vmatpush.msra.mxu0 0.0
  %326 = vmatpush.msra.mxu0 0.0
  %327 = vmatpush.msra.mxu0 0.0
  %328 = vmatpush.msra.mxu0 0.0
  %329 = vmatpush.msra.mxu0 0.0
  %330 = vmatpush.msra.mxu0 0.0
  %331 = vmatpush.msra.mxu0 0.0
  %332 = vmatpush.msra.mxu0 0.0
  %333 = vmatpush.msra.mxu0 0.0
  %334 = vmatpush.msra.mxu0 0.0
  %335 = vmatpush.msra.mxu0 %v128
  %336 = vmatpush.msra.mxu0 %v127
  %337 = vmatpush.msra.mxu0 %v126
  %338 = vmatpush.msra.mxu0 %v125
  %339 = vmatmul.f32.gmra.mxu0 %v321
  %v340 = vpop.f32.mrf.mxu0
  %v341 = vadd.f32 0.0, %v340
  %342 = vdwg.mxu0
  %v343 = vadd.f32 %v114, %v341
  %v344 = vtanh.pop %v343
  %v345 = vmul.f32 %v344, %v43
  %v346 = vadd.f32 %v345, %v44
  %v347 = vmul.f32 %v346, %v311
  %349 = vrot.lane.b32.xlu0 %v346, 64
  %v350 = vpop.permute.xlu0 %349
  %v352 = vmul.f32 %v346, %v350
  %354 = vrot.lane.b32.xlu0 %v352, 32
  %v355 = vpop.permute.xlu0 %354
  %v357 = vadd.f32 %v347, %v355
  %v358 = vtanh.pop %v357
  %360 = vrot.lane.b32.xlu0 %v358, 64
  %v361 = vpop.permute.xlu0 %360
  %v363 = vmul.f32 %v346, %v361
  %365 = vrot.lane.b32.xlu0 %v363, 32
  %v366 = vpop.permute.xlu0 %365
  %v367 = vsel %vm131, %v366, 0
  %369 = vmatpush.msra.mxu0 0.0
  %370 = vmatpush.msra.mxu0 0.0
  %371 = vmatpush.msra.mxu0 0.0
  %372 = vmatpush.msra.mxu0 0.0
  %373 = vmatpush.msra.mxu0 0.0
  %374 = vmatpush.msra.mxu0 0.0
  %375 = vmatpush.msra.mxu0 0.0
  %376 = vmatpush.msra.mxu0 0.0
  %377 = vmatpush.msra.mxu0 0.0
  %378 = vmatpush.msra.mxu0 0.0
  %379 = vmatpush.msra.mxu0 0.0
  %380 = vmatpush.msra.mxu0 0.0
  %381 = vmatpush.msra.mxu0 %v128
  %382 = vmatpush.msra.mxu0 %v127
  %383 = vmatpush.msra.mxu0 %v126
  %384 = vmatpush.msra.mxu0 %v125
  %385 = vmatmul.f32.gmra.mxu0 %v367
  %v386 = vpop.f32.mrf.mxu0
  %v387 = vadd.f32 0.0, %v386
  %388 = vdwg.mxu0
  %v389 = vadd.f32 %v117, %v387
  %v390 = vtanh.pop %v389
  %v391 = vmul.f32 %v390, %v43
  %v392 = vadd.f32 %v391, %v44
  %v393 = vmul.f32 %v392, %v357
  %395 = vrot.lane.b32.xlu0 %v392, 64
  %v396 = vpop.permute.xlu0 %395
  %v398 = vmul.f32 %v392, %v396
  %400 = vrot.lane.b32.xlu0 %v398, 32
  %v401 = vpop.permute.xlu0 %400
  %v403 = vadd.f32 %v393, %v401
  %v404 = vtanh.pop %v403
  %406 = vrot.lane.b32.xlu0 %v404, 64
  %v407 = vpop.permute.xlu0 %406
  %v409 = vmul.f32 %v392, %v407
  %411 = vrot.lane.b32.xlu0 %v409, 32
  %v412 = vpop.permute.xlu0 %411
  %v413 = vsel %vm131, %v412, 0
  %415 = vmatpush.msra.mxu0 0.0
  %416 = vmatpush.msra.mxu0 0.0
  %417 = vmatpush.msra.mxu0 0.0
  %418 = vmatpush.msra.mxu0 0.0
  %419 = vmatpush.msra.mxu0 0.0
  %420 = vmatpush.msra.mxu0 0.0
  %421 = vmatpush.msra.mxu0 0.0
  %422 = vmatpush.msra.mxu0 0.0
  %423 = vmatpush.msra.mxu0 0.0
  %424 = vmatpush.msra.mxu0 0.0
  %425 = vmatpush.msra.mxu0 0.0
  %426 = vmatpush.msra.mxu0 0.0
  %427 = vmatpush.msra.mxu0 %v128
  %428 = vmatpush.msra.mxu0 %v127
  %429 = vmatpush.msra.mxu0 %v126
  %430 = vmatpush.msra.mxu0 %v125
  %431 = vmatmul.f32.gmra.mxu0 %v413
  %v432 = vpop.f32.mrf.mxu0
  %v433 = vadd.f32 0.0, %v432
  %434 = vdwg.mxu0
  %v435 = vadd.f32 %v120, %v433
  %v436 = vtanh.pop %v435
  %v437 = vmul.f32 %v436, %v43
  %v438 = vadd.f32 %v437, %v44
  %v439 = vmul.f32 %v438, %v403
  %441 = vrot.lane.b32.xlu0 %v438, 64
  %v442 = vpop.permute.xlu0 %441
  %v444 = vmul.f32 %v438, %v442
  %446 = vrot.lane.b32.xlu0 %v444, 32
  %v447 = vpop.permute.xlu0 %446
  %v449 = vadd.f32 %v439, %v447
  %v450 = vtanh.pop %v449
  %452 = vrot.lane.b32.xlu0 %v450, 64
  %v453 = vpop.permute.xlu0 %452
  %v455 = vmul.f32 %v438, %v453
  %457 = vrot.lane.b32.xlu0 %v455, 32
  %v458 = vpop.permute.xlu0 %457
  %v459 = vsel %vm131, %v458, 0
  %461 = vmatpush.msra.mxu0 0.0
  %462 = vmatpush.msra.mxu0 0.0
  %463 = vmatpush.msra.mxu0 0.0
  %464 = vmatpush.msra.mxu0 0.0
  %465 = vmatpush.msra.mxu0 0.0
  %466 = vmatpush.msra.mxu0 0.0
  %467 = vmatpush.msra.mxu0 0.0
  %468 = vmatpush.msra.mxu0 0.0
  %469 = vmatpush.msra.mxu0 0.0
  %470 = vmatpush.msra.mxu0 0.0
  %471 = vmatpush.msra.mxu0 0.0
  %472 = vmatpush.msra.mxu0 0.0
  %473 = vmatpush.msra.mxu0 %v128
  %474 = vmatpush.msra.mxu0 %v127
  %475 = vmatpush.msra.mxu0 %v126
  %476 = vmatpush.msra.mxu0 %v125
  %477 = vmatmul.f32.gmra.mxu0 %v459
  %v478 = vpop.f32.mrf.mxu0
  %v479 = vadd.f32 0.0, %v478
  %480 = vdwg.mxu0
  %v481 = vadd.f32 %v123, %v479
  %v482 = vtanh.pop %v481
  %v483 = vmul.f32 %v482, %v43
  %v484 = vadd.f32 %v483, %v44
  %v485 = vmul.f32 %v484, %v449
  %487 = vrot.lane.b32.xlu0 %v484, 64
  %v488 = vpop.permute.xlu0 %487
  %v490 = vmul.f32 %v484, %v488
  %492 = vrot.lane.b32.xlu0 %v490, 32
  %v493 = vpop.permute.xlu0 %492
  %v495 = vadd.f32 %v485, %v493
  %v496 = vtanh.pop %v495
  %498 = vrot.lane.b32.xlu0 %v496, 64
  %v499 = vpop.permute.xlu0 %498
  %v501 = vmul.f32 %v484, %v499
  %503 = vrot.lane.b32.xlu0 %v501, 32
  %v504 = vpop.permute.xlu0 %503
  %506 = vst.msk [vmem:[%s11] sm:$0xff] %vm131, %v504
  %508 = vrot.lane.b32.xlu0 %v495, 96
  %v509 = vpop.permute.xlu0 %508
  %511 = vst.msk [vmem:[%s12] sm:$0xff] %vm131, %v509
  %v512 = vld [vmem:[%s4] sm:$0xff]
  %v513 = vld [vmem:[%s4 + $0x8] sm:$0xff]
  %v514 = vld [vmem:[%s4 + $0x10] sm:$0xff]
  %v515 = vld [vmem:[%s4 + $0x18] sm:$0xff]
  %v516 = vld [vmem:[%s5] sm:$0x1]
  %v518 = vperm.slane %v516, 0
  %v520 = vsel %vm131, %v504, 0
  %522 = vmatpush.msra.mxu0 0.0
  %523 = vmatpush.msra.mxu0 0.0
  %524 = vmatpush.msra.mxu0 0.0
  %525 = vmatpush.msra.mxu0 0.0
  %526 = vmatpush.msra.mxu0 0.0
  %527 = vmatpush.msra.mxu0 0.0
  %528 = vmatpush.msra.mxu0 0.0
  %529 = vmatpush.msra.mxu0 0.0
  %530 = vmatpush.msra.mxu0 0.0
  %531 = vmatpush.msra.mxu0 0.0
  %532 = vmatpush.msra.mxu0 0.0
  %533 = vmatpush.msra.mxu0 0.0
  %534 = vmatpush.msra.mxu0 %v515
  %535 = vmatpush.msra.mxu0 %v514
  %536 = vmatpush.msra.mxu0 %v513
  %537 = vmatpush.msra.mxu0 %v512
  %538 = vmatmul.f32.gmra.mxu0 %v183
  %v539 = vpop.f32.mrf.mxu0
  %v540 = vadd.f32 %v518, %v539
  %541 = vmatmul.f32.gmra.mxu0 %v229
  %v542 = vpop.f32.mrf.mxu0
  %v543 = vadd.f32 %v518, %v542
  %544 = vmatmul.f32.gmra.mxu0 %v275
  %v545 = vpop.f32.mrf.mxu0
  %v546 = vadd.f32 %v518, %v545
  %547 = vmatmul.f32.gmra.mxu0 %v321
  %v548 = vpop.f32.mrf.mxu0
  %v549 = vadd.f32 %v518, %v548
  %550 = vmatmul.f32.gmra.mxu0 %v367
  %v551 = vpop.f32.mrf.mxu0
  %v552 = vadd.f32 %v518, %v551
  %553 = vmatmul.f32.gmra.mxu0 %v413
  %v554 = vpop.f32.mrf.mxu0
  %v555 = vadd.f32 %v518, %v554
  %556 = vmatmul.f32.gmra.mxu0 %v459
  %v557 = vpop.f32.mrf.mxu0
  %v558 = vadd.f32 %v518, %v557
  %559 = vmatmul.f32.gmra.mxu0 %v520
  %v560 = vpop.f32.mrf.mxu0
  %v561 = vadd.f32 %v518, %v560
  %562 = vdwg.mxu0
  %s563 = scalar_lea.vmem %s3, 32
  %v564 = vld [vmem:[%s563] sm:$0xff]
  %v565 = vld [vmem:[%s563 + $0x8] sm:$0xff]
  %v566 = vld [vmem:[%s563 + $0x10] sm:$0xff]
  %v567 = vld [vmem:[%s563 + $0x18] sm:$0xff]
  %s568 = scalar_lea.vmem %s6, 8
  %v569 = vld [vmem:[%s568] sm:$0xff]
  %s570 = scalar_lea.vmem %s7, 8
  %v571 = vld [vmem:[%s570] sm:$0xff]
  %v573 = vsel %vm131, %v569, 0
  %575 = vmatpush.msra.mxu0 0.0
  %576 = vmatpush.msra.mxu0 0.0
  %577 = vmatpush.msra.mxu0 0.0
  %578 = vmatpush.msra.mxu0 0.0
  %579 = vmatpush.msra.mxu0 0.0
  %580 = vmatpush.msra.mxu0 0.0
  %581 = vmatpush.msra.mxu0 0.0
  %582 = vmatpush.msra.mxu0 0.0
  %583 = vmatpush.msra.mxu0 0.0
  %584 = vmatpush.msra.mxu0 0.0
  %585 = vmatpush.msra.mxu0 0.0
  %586 = vmatpush.msra.mxu0 0.0
  %587 = vmatpush.msra.mxu0 %v567
  %588 = vmatpush.msra.mxu0 %v566
  %589 = vmatpush.msra.mxu0 %v565
  %590 = vmatpush.msra.mxu0 %v564
  %591 = vmatmul.f32.gmra.mxu0 %v573
  %v592 = vpop.f32.mrf.mxu0
  %v593 = vadd.f32 0.0, %v592
  %594 = vdwg.mxu0
  %v595 = vadd.f32 %v540, %v593
  %v596 = vtanh.pop %v595
  %v597 = vmul.f32 %v596, %v43
  %v598 = vadd.f32 %v597, %v44
  %600 = vrot.lane.b32.xlu0 %v571, 32
  %v601 = vpop.permute.xlu0 %600
  %v603 = vmul.f32 %v598, %v601
  %605 = vrot.lane.b32.xlu0 %v598, 64
  %v606 = vpop.permute.xlu0 %605
  %v608 = vmul.f32 %v598, %v606
  %610 = vrot.lane.b32.xlu0 %v608, 32
  %v611 = vpop.permute.xlu0 %610
  %v613 = vadd.f32 %v603, %v611
  %v614 = vtanh.pop %v613
  %616 = vrot.lane.b32.xlu0 %v614, 64
  %v617 = vpop.permute.xlu0 %616
  %v619 = vmul.f32 %v598, %v617
  %621 = vrot.lane.b32.xlu0 %v619, 32
  %v622 = vpop.permute.xlu0 %621
  %v623 = vsel %vm131, %v622, 0
  %625 = vmatpush.msra.mxu0 0.0
  %626 = vmatpush.msra.mxu0 0.0
  %627 = vmatpush.msra.mxu0 0.0
  %628 = vmatpush.msra.mxu0 0.0
  %629 = vmatpush.msra.mxu0 0.0
  %630 = vmatpush.msra.mxu0 0.0
  %631 = vmatpush.msra.mxu0 0.0
  %632 = vmatpush.msra.mxu0 0.0
  %633 = vmatpush.msra.mxu0 0.0
  %634 = vmatpush.msra.mxu0 0.0
  %635 = vmatpush.msra.mxu0 0.0
  %636 = vmatpush.msra.mxu0 0.0
  %637 = vmatpush.msra.mxu0 %v567
  %638 = vmatpush.msra.mxu0 %v566
  %639 = vmatpush.msra.mxu0 %v565
  %640 = vmatpush.msra.mxu0 %v564
  %641 = vmatmul.f32.gmra.mxu0 %v623
  %v642 = vpop.f32.mrf.mxu0
  %v643 = vadd.f32 0.0, %v642
  %644 = vdwg.mxu0
  %v645 = vadd.f32 %v543, %v643
  %v646 = vtanh.pop %v645
  %v647 = vmul.f32 %v646, %v43
  %v648 = vadd.f32 %v647, %v44
  %v649 = vmul.f32 %v648, %v613
  %651 = vrot.lane.b32.xlu0 %v648, 64
  %v652 = vpop.permute.xlu0 %651
  %v654 = vmul.f32 %v648, %v652
  %656 = vrot.lane.b32.xlu0 %v654, 32
  %v657 = vpop.permute.xlu0 %656
  %v659 = vadd.f32 %v649, %v657
  %v660 = vtanh.pop %v659
  %662 = vrot.lane.b32.xlu0 %v660, 64
  %v663 = vpop.permute.xlu0 %662
  %v665 = vmul.f32 %v648, %v663
  %667 = vrot.lane.b32.xlu0 %v665, 32
  %v668 = vpop.permute.xlu0 %667
  %v669 = vsel %vm131, %v668, 0
  %671 = vmatpush.msra.mxu0 0.0
  %672 = vmatpush.msra.mxu0 0.0
  %673 = vmatpush.msra.mxu0 0.0
  %674 = vmatpush.msra.mxu0 0.0
  %675 = vmatpush.msra.mxu0 0.0
  %676 = vmatpush.msra.mxu0 0.0
  %677 = vmatpush.msra.mxu0 0.0
  %678 = vmatpush.msra.mxu0 0.0
  %679 = vmatpush.msra.mxu0 0.0
  %680 = vmatpush.msra.mxu0 0.0
  %681 = vmatpush.msra.mxu0 0.0
  %682 = vmatpush.msra.mxu0 0.0
  %683 = vmatpush.msra.mxu0 %v567
  %684 = vmatpush.msra.mxu0 %v566
  %685 = vmatpush.msra.mxu0 %v565
  %686 = vmatpush.msra.mxu0 %v564
  %687 = vmatmul.f32.gmra.mxu0 %v669
  %v688 = vpop.f32.mrf.mxu0
  %v689 = vadd.f32 0.0, %v688
  %690 = vdwg.mxu0
  %v691 = vadd.f32 %v546, %v689
  %v692 = vtanh.pop %v691
  %v693 = vmul.f32 %v692, %v43
  %v694 = vadd.f32 %v693, %v44
  %v695 = vmul.f32 %v694, %v659
  %697 = vrot.lane.b32.xlu0 %v694, 64
  %v698 = vpop.permute.xlu0 %697
  %v700 = vmul.f32 %v694, %v698
  %702 = vrot.lane.b32.xlu0 %v700, 32
  %v703 = vpop.permute.xlu0 %702
  %v705 = vadd.f32 %v695, %v703
  %v706 = vtanh.pop %v705
  %708 = vrot.lane.b32.xlu0 %v706, 64
  %v709 = vpop.permute.xlu0 %708
  %v711 = vmul.f32 %v694, %v709
  %713 = vrot.lane.b32.xlu0 %v711, 32
  %v714 = vpop.permute.xlu0 %713
  %v715 = vsel %vm131, %v714, 0
  %717 = vmatpush.msra.mxu0 0.0
  %718 = vmatpush.msra.mxu0 0.0
  %719 = vmatpush.msra.mxu0 0.0
  %720 = vmatpush.msra.mxu0 0.0
  %721 = vmatpush.msra.mxu0 0.0
  %722 = vmatpush.msra.mxu0 0.0
  %723 = vmatpush.msra.mxu0 0.0
  %724 = vmatpush.msra.mxu0 0.0
  %725 = vmatpush.msra.mxu0 0.0
  %726 = vmatpush.msra.mxu0 0.0
  %727 = vmatpush.msra.mxu0 0.0
  %728 = vmatpush.msra.mxu0 0.0
  %729 = vmatpush.msra.mxu0 %v567
  %730 = vmatpush.msra.mxu0 %v566
  %731 = vmatpush.msra.mxu0 %v565
  %732 = vmatpush.msra.mxu0 %v564
  %733 = vmatmul.f32.gmra.mxu0 %v715
  %v734 = vpop.f32.mrf.mxu0
  %v735 = vadd.f32 0.0, %v734
  %736 = vdwg.mxu0
  %v737 = vadd.f32 %v549, %v735
  %v738 = vtanh.pop %v737
  %v739 = vmul.f32 %v738, %v43
  %v740 = vadd.f32 %v739, %v44
  %v741 = vmul.f32 %v740, %v705
  %743 = vrot.lane.b32.xlu0 %v740, 64
  %v744 = vpop.permute.xlu0 %743
  %v746 = vmul.f32 %v740, %v744
  %748 = vrot.lane.b32.xlu0 %v746, 32
  %v749 = vpop.permute.xlu0 %748
  %v751 = vadd.f32 %v741, %v749
  %v752 = vtanh.pop %v751
  %754 = vrot.lane.b32.xlu0 %v752, 64
  %v755 = vpop.permute.xlu0 %754
  %v757 = vmul.f32 %v740, %v755
  %759 = vrot.lane.b32.xlu0 %v757, 32
  %v760 = vpop.permute.xlu0 %759
  %v761 = vsel %vm131, %v760, 0
  %763 = vmatpush.msra.mxu0 0.0
  %764 = vmatpush.msra.mxu0 0.0
  %765 = vmatpush.msra.mxu0 0.0
  %766 = vmatpush.msra.mxu0 0.0
  %767 = vmatpush.msra.mxu0 0.0
  %768 = vmatpush.msra.mxu0 0.0
  %769 = vmatpush.msra.mxu0 0.0
  %770 = vmatpush.msra.mxu0 0.0
  %771 = vmatpush.msra.mxu0 0.0
  %772 = vmatpush.msra.mxu0 0.0
  %773 = vmatpush.msra.mxu0 0.0
  %774 = vmatpush.msra.mxu0 0.0
  %775 = vmatpush.msra.mxu0 %v567
  %776 = vmatpush.msra.mxu0 %v566
  %777 = vmatpush.msra.mxu0 %v565
  %778 = vmatpush.msra.mxu0 %v564
  %779 = vmatmul.f32.gmra.mxu0 %v761
  %v780 = vpop.f32.mrf.mxu0
  %v781 = vadd.f32 0.0, %v780
  %782 = vdwg.mxu0
  %v783 = vadd.f32 %v552, %v781
  %v784 = vtanh.pop %v783
  %v785 = vmul.f32 %v784, %v43
  %v786 = vadd.f32 %v785, %v44
  %v787 = vmul.f32 %v786, %v751
  %789 = vrot.lane.b32.xlu0 %v786, 64
  %v790 = vpop.permute.xlu0 %789
  %v792 = vmul.f32 %v786, %v790
  %794 = vrot.lane.b32.xlu0 %v792, 32
  %v795 = vpop.permute.xlu0 %794
  %v797 = vadd.f32 %v787, %v795
  %v798 = vtanh.pop %v797
  %800 = vrot.lane.b32.xlu0 %v798, 64
  %v801 = vpop.permute.xlu0 %800
  %v803 = vmul.f32 %v786, %v801
  %805 = vrot.lane.b32.xlu0 %v803, 32
  %v806 = vpop.permute.xlu0 %805
  %v807 = vsel %vm131, %v806, 0
  %809 = vmatpush.msra.mxu0 0.0
  %810 = vmatpush.msra.mxu0 0.0
  %811 = vmatpush.msra.mxu0 0.0
  %812 = vmatpush.msra.mxu0 0.0
  %813 = vmatpush.msra.mxu0 0.0
  %814 = vmatpush.msra.mxu0 0.0
  %815 = vmatpush.msra.mxu0 0.0
  %816 = vmatpush.msra.mxu0 0.0
  %817 = vmatpush.msra.mxu0 0.0
  %818 = vmatpush.msra.mxu0 0.0
  %819 = vmatpush.msra.mxu0 0.0
  %820 = vmatpush.msra.mxu0 0.0
  %821 = vmatpush.msra.mxu0 %v567
  %822 = vmatpush.msra.mxu0 %v566
  %823 = vmatpush.msra.mxu0 %v565
  %824 = vmatpush.msra.mxu0 %v564
  %825 = vmatmul.f32.gmra.mxu0 %v807
  %v826 = vpop.f32.mrf.mxu0
  %v827 = vadd.f32 0.0, %v826
  %828 = vdwg.mxu0
  %v829 = vadd.f32 %v555, %v827
  %v830 = vtanh.pop %v829
  %v831 = vmul.f32 %v830, %v43
  %v832 = vadd.f32 %v831, %v44
  %v833 = vmul.f32 %v832, %v797
  %835 = vrot.lane.b32.xlu0 %v832, 64
  %v836 = vpop.permute.xlu0 %835
  %v838 = vmul.f32 %v832, %v836
  %840 = vrot.lane.b32.xlu0 %v838, 32
  %v841 = vpop.permute.xlu0 %840
  %v843 = vadd.f32 %v833, %v841
  %v844 = vtanh.pop %v843
  %846 = vrot.lane.b32.xlu0 %v844, 64
  %v847 = vpop.permute.xlu0 %846
  %v849 = vmul.f32 %v832, %v847
  %851 = vrot.lane.b32.xlu0 %v849, 32
  %v852 = vpop.permute.xlu0 %851
  %v853 = vsel %vm131, %v852, 0
  %855 = vmatpush.msra.mxu0 0.0
  %856 = vmatpush.msra.mxu0 0.0
  %857 = vmatpush.msra.mxu0 0.0
  %858 = vmatpush.msra.mxu0 0.0
  %859 = vmatpush.msra.mxu0 0.0
  %860 = vmatpush.msra.mxu0 0.0
  %861 = vmatpush.msra.mxu0 0.0
  %862 = vmatpush.msra.mxu0 0.0
  %863 = vmatpush.msra.mxu0 0.0
  %864 = vmatpush.msra.mxu0 0.0
  %865 = vmatpush.msra.mxu0 0.0
  %866 = vmatpush.msra.mxu0 0.0
  %867 = vmatpush.msra.mxu0 %v567
  %868 = vmatpush.msra.mxu0 %v566
  %869 = vmatpush.msra.mxu0 %v565
  %870 = vmatpush.msra.mxu0 %v564
  %871 = vmatmul.f32.gmra.mxu0 %v853
  %v872 = vpop.f32.mrf.mxu0
  %v873 = vadd.f32 0.0, %v872
  %874 = vdwg.mxu0
  %v875 = vadd.f32 %v558, %v873
  %v876 = vtanh.pop %v875
  %v877 = vmul.f32 %v876, %v43
  %v878 = vadd.f32 %v877, %v44
  %v879 = vmul.f32 %v878, %v843
  %881 = vrot.lane.b32.xlu0 %v878, 64
  %v882 = vpop.permute.xlu0 %881
  %v884 = vmul.f32 %v878, %v882
  %886 = vrot.lane.b32.xlu0 %v884, 32
  %v887 = vpop.permute.xlu0 %886
  %v889 = vadd.f32 %v879, %v887
  %v890 = vtanh.pop %v889
  %892 = vrot.lane.b32.xlu0 %v890, 64
  %v893 = vpop.permute.xlu0 %892
  %v895 = vmul.f32 %v878, %v893
  %897 = vrot.lane.b32.xlu0 %v895, 32
  %v898 = vpop.permute.xlu0 %897
  %v899 = vsel %vm131, %v898, 0
  %901 = vmatpush.msra.mxu0 0.0
  %902 = vmatpush.msra.mxu0 0.0
  %903 = vmatpush.msra.mxu0 0.0
  %904 = vmatpush.msra.mxu0 0.0
  %905 = vmatpush.msra.mxu0 0.0
  %906 = vmatpush.msra.mxu0 0.0
  %907 = vmatpush.msra.mxu0 0.0
  %908 = vmatpush.msra.mxu0 0.0
  %909 = vmatpush.msra.mxu0 0.0
  %910 = vmatpush.msra.mxu0 0.0
  %911 = vmatpush.msra.mxu0 0.0
  %912 = vmatpush.msra.mxu0 0.0
  %913 = vmatpush.msra.mxu0 %v567
  %914 = vmatpush.msra.mxu0 %v566
  %915 = vmatpush.msra.mxu0 %v565
  %916 = vmatpush.msra.mxu0 %v564
  %917 = vmatmul.f32.gmra.mxu0 %v899
  %v918 = vpop.f32.mrf.mxu0
  %v919 = vadd.f32 0.0, %v918
  %920 = vdwg.mxu0
  %v921 = vadd.f32 %v561, %v919
  %v922 = vtanh.pop %v921
  %v923 = vmul.f32 %v922, %v43
  %v924 = vadd.f32 %v923, %v44
  %v925 = vmul.f32 %v924, %v889
  %927 = vrot.lane.b32.xlu0 %v924, 64
  %v928 = vpop.permute.xlu0 %927
  %v930 = vmul.f32 %v924, %v928
  %932 = vrot.lane.b32.xlu0 %v930, 32
  %v933 = vpop.permute.xlu0 %932
  %v935 = vadd.f32 %v925, %v933
  %v936 = vtanh.pop %v935
  %938 = vrot.lane.b32.xlu0 %v936, 64
  %v939 = vpop.permute.xlu0 %938
  %v941 = vmul.f32 %v924, %v939
  %943 = vrot.lane.b32.xlu0 %v941, 32
  %v944 = vpop.permute.xlu0 %943
  %s946 = scalar_lea.vmem %s11, 8
  %947 = vst.msk [vmem:[%s946] sm:$0xff] %vm131, %v944
  %949 = vrot.lane.b32.xlu0 %v935, 96
  %v950 = vpop.permute.xlu0 %949
  %s952 = scalar_lea.vmem %s12, 8
  %953 = vst.msk [vmem:[%s952] sm:$0xff] %vm131, %v950
  %v954 = vld [vmem:[%s8] sm:$0xff]
  %v955 = vld [vmem:[%s8 + $0x8] sm:$0xff]
  %v956 = vld [vmem:[%s8 + $0x10] sm:$0xff]
  %v957 = vld [vmem:[%s8 + $0x18] sm:$0xff]
  %v958 = vld [vmem:[%s9] sm:$0x1]
  %v960 = vperm.slane %v958, 0
  %v962 = vsel %vm131, %v944, 0
  %964 = vmatpush.msra.mxu0 0.0
  %965 = vmatpush.msra.mxu0 0.0
  %966 = vmatpush.msra.mxu0 0.0
  %967 = vmatpush.msra.mxu0 0.0
  %968 = vmatpush.msra.mxu0 0.0
  %969 = vmatpush.msra.mxu0 0.0
  %970 = vmatpush.msra.mxu0 0.0
  %971 = vmatpush.msra.mxu0 0.0
  %972 = vmatpush.msra.mxu0 0.0
  %973 = vmatpush.msra.mxu0 0.0
  %974 = vmatpush.msra.mxu0 0.0
  %975 = vmatpush.msra.mxu0 0.0
  %976 = vmatpush.msra.mxu0 %v957
  %977 = vmatpush.msra.mxu0 %v956
  %978 = vmatpush.msra.mxu0 %v955
  %979 = vmatpush.msra.mxu0 %v954
  %980 = vmatmul.f32.gmra.mxu0 %v962
  %v981 = vpop.f32.mrf.mxu0
  %v982 = vadd.f32 %v960, %v981
  %983 = vdwg.mxu0
  %vm984 = vcmask 31744
  %985 = vst.msk [vmem:[%s10] sm:$0xff] %vm984, %v982
  // Predicated region
  $region42: #{lstm_regressor_forward.1} parent=0 // pred_check
    _
  $region43: #{lstm_regressor_forward.1} parent=0 // pred_check_branch
    %987 = sbr.rel (0) target = $region45
  $region44: #{lstm_regressor_forward.1} parent=0 // pred_region
    _
  $region45: #{lstm_regressor_forward.1} parent=0 // pred_fallthru
    _
  // Predicated region
  $region46: #{lstm_regressor_forward.1} parent=0 // pred_check
    _
  $region47: #{lstm_regressor_forward.1} parent=0 // pred_check_branch
    %989 = sbr.rel (0) target = $region49
  $region48: #{lstm_regressor_forward.1} parent=0 // pred_region
    _
  $region49: #{lstm_regressor_forward.1} parent=0 // pred_fallthru
    _
  // Predicated region
  $region50: #{lstm_regressor_forward.1} parent=0 // pred_check
    _
  $region51: #{lstm_regressor_forward.1} parent=0 // pred_check_branch
    %991 = sbr.rel (0) target = $region53
  $region52: #{lstm_regressor_forward.1} parent=0 // pred_region
    _
  $region53: #{lstm_regressor_forward.1} parent=0 // pred_fallthru
    _
  // Predicated region
  $region54: #{lstm_regressor_forward.1} parent=0 // pred_check
    _
  $region55: #{lstm_regressor_forward.1} parent=0 // pred_check_branch
    %993 = sbr.rel (0) target = $region57
  $region56: #{lstm_regressor_forward.1} parent=0 // pred_region
    _
  $region57: #{lstm_regressor_forward.1} parent=0 // pred_fallthru
    _
  // Predicated region
  $region58: #{lstm_regressor_forward.1} parent=0 // pred_check
    _
  $region59: #{lstm_regressor_forward.1} parent=0 // pred_check_branch
    %995 = sbr.rel (0) target = $region61
  $region60: #{lstm_regressor_forward.1} parent=0 // pred_region
    _
  $region61: #{lstm_regressor_forward.1} parent=0 // pred_fallthru
    _
  // Predicated region
  $region62: #{lstm_regressor_forward.1} parent=0 // pred_check
    _
  $region63: #{lstm_regressor_forward.1} parent=0 // pred_check_branch
    %997 = sbr.rel (0) target = $region65
  $region64: #{lstm_regressor_forward.1} parent=0 // pred_region
    _
  $region65: #{lstm_regressor_forward.1} parent=0 // pred_fallthru
    _

</llo_original>
